<compile_context>
chip_gen: v5e
topology: v5e:2x2
jax: 0.10.0
libtpu: 0.0.40
codegen_flags: <defaults>
</compile_context>

<pallas_src>
import functools

import jax
import jax.numpy as jnp
from jax.experimental import pallas as pl
from jax.experimental.pallas import tpu as pltpu


# ----------------------------------------------------------------------------
# Single fused Pallas kernel: token ids + embedding table in, packed (h, c) out.
# ----------------------------------------------------------------------------
def _encoder_kernel(*refs, n_layers, seq_len, batch_pad, hid_dim, input_dim):
    """Fused embedding + multi-layer LSTM encoder.

    refs = (src_ids, emb_table, [w_ih_T, w_hh_T, b] * n_layers, hc_out, act_scratch)

      src_ids    : (seq_len*batch_pad, 1) int32   time-major, batch padded to 8
      emb_table  : (input_dim, emb_dim)   f32
      w_ih_T     : (in_dim, 4H) f32               (pre-transposed at prep time)
      w_hh_T     : (H, 4H)      f32               (pre-transposed at prep time)
      b          : (1, 4H)      f32               (b_ih + b_hh, pre-summed at prep time)
      hc_out     : (n_layers, batch_pad, 2H) f32  [h | c] packed along lanes
      act_scratch: (seq_len*batch_pad, H) f32 VMEM -- inter-layer acts, never HBM
    """
    src_ref = refs[0]
    emb_ref = refs[1]
    w_refs = refs[2:2 + 3 * n_layers]
    hc_out_ref = refs[2 + 3 * n_layers]
    act_sc = refs[3 + 3 * n_layers]

    hid = hid_dim
    n_tok = seq_len * batch_pad

    # Fused embedding lookup as a gather-free one-hot matmul (exact: one-hot entries are
    # 0/1, so the MXU pass reconstructs the f32 table rows bit-exactly).
    ids = src_ref[...]                                                   # (n_tok, 1) i32
    vocab_iota = jax.lax.broadcasted_iota(jnp.int32, (n_tok, input_dim), 1)
    one_hot = jnp.where(ids == vocab_iota, 1.0, 0.0).astype(jnp.float32)  # (n_tok, V)
    x0 = jnp.dot(one_hot, emb_ref[...],
                 preferred_element_type=jnp.float32)                     # (n_tok, emb)
    # Dropout(embedded): eval-mode identity.

    for l in range(n_layers):                      # layer loop: unrolled at trace time
        w_ih_t = w_refs[3 * l][...]                # (in_dim, 4H)
        w_hh_t = w_refs[3 * l + 1][...]            # (H, 4H)
        b = w_refs[3 * l + 2][...]                 # (1, 4H)

        x = x0 if l == 0 else act_sc[...]          # (n_tok, in_dim), VMEM resident

        # Hoisted input projection + bias: ONE batched matmul per layer, off the serial
        # recurrence path.
        gx = jnp.dot(x, w_ih_t, preferred_element_type=jnp.float32) + b  # (n_tok, 4H)

        h = jnp.zeros((batch_pad, hid), jnp.float32)
        c = jnp.zeros((batch_pad, hid), jnp.float32)

        # seq_len is small & static -> fully unrolled recurrence; every slice offset is a
        # static multiple of 8 sublanes (batch padded), so all accesses are full-tile and
        # unmasked.  (Use lax.fori_loop + gx in VMEM scratch for long sequences.)
        for t in range(seq_len):
            row = t * batch_pad
            gates = gx[row:row + batch_pad, :] + jnp.dot(
                h, w_hh_t, preferred_element_type=jnp.float32)            # (8, 4H)
            # With batch_pad=8 and 4H=128 the gate tile is exactly one f32 vreg, so two
            # full-tile EUP passes (sigmoid + tanh) are optimal; slice first once the
            # gate tile spans multiple vregs.  PyTorch gate order: i, f, g, o.
            sig = jax.nn.sigmoid(gates)
            th = jnp.tanh(gates)
            i_g = sig[:, 0 * hid:1 * hid]
            f_g = sig[:, 1 * hid:2 * hid]
            g_g = th[:, 2 * hid:3 * hid]
            o_g = sig[:, 3 * hid:4 * hid]
            c = f_g * c + i_g * g_g
            h = o_g * jnp.tanh(c)
            if l < n_layers - 1:
                # Tile-boundary-aligned VMEM store; last layer's output seq never written.
                act_sc[row:row + batch_pad, :] = h

        # One packed, sublane-aligned writeback per layer: [h | c] along lanes.
        hc_out_ref[l] = jnp.concatenate([h, c], axis=-1)


# ----------------------------------------------------------------------------
# Parameter construction / one-time preparation (hoisted off the per-call path)
# ----------------------------------------------------------------------------
def init_encoder_params(key, input_dim, emb_dim, hid_dim, n_layers):
    keys = jax.random.split(key, 1 + 4 * n_layers)
    params = {"embedding": jax.random.normal(keys[0], (input_dim, emb_dim), jnp.float32)}
    k = 1.0 / jnp.sqrt(hid_dim)
    layers = []
    for l in range(n_layers):
        in_dim = emb_dim if l == 0 else hid_dim
        kw = keys[1 + 4 * l: 1 + 4 * (l + 1)]
        layers.append({
            "w_ih": jax.random.uniform(kw[0], (4 * hid_dim, in_dim), jnp.float32, -k, k),
            "w_hh": jax.random.uniform(kw[1], (4 * hid_dim, hid_dim), jnp.float32, -k, k),
            "b_ih": jax.random.uniform(kw[2], (4 * hid_dim,), jnp.float32, -k, k),
            "b_hh": jax.random.uniform(kw[3], (4 * hid_dim,), jnp.float32, -k, k),
        })
    params["layers"] = layers
    return params


def prepare_encoder_params(params):
    """One-time weight prep: transpose to (in_dim, 4H) MXU-friendly layout and fold
    b_ih + b_hh into a single bias row.  Done once, not per forward call."""
    prepared = {"embedding": params["embedding"].astype(jnp.float32), "layers": []}
    for lp in params["layers"]:
        prepared["layers"].append({
            "w_ih_t": jnp.asarray(lp["w_ih"].T, jnp.float32),
            "w_hh_t": jnp.asarray(lp["w_hh"].T, jnp.float32),
            "b": (lp["b_ih"] + lp["b_hh"]).reshape(1, -1).astype(jnp.float32),
        })
    return prepared


# ----------------------------------------------------------------------------
# Encoder forward: tiny pad/flatten glue + single fused kernel
# ----------------------------------------------------------------------------
def encoder_forward(prepared, src):
    """src: (seq_len, batch) int32.  Returns (hidden, cell), each (n_layers, batch, hid)."""
    seq_len, batch = src.shape
    layers = prepared["layers"]
    n_layers = len(layers)
    hid = layers[0]["w_hh_t"].shape[0]
    emb = prepared["embedding"]
    input_dim, _ = emb.shape

    # Sublane-pad the batch so every per-timestep tile inside the kernel is 8-aligned.
    b_pad = max(8, ((batch + 7) // 8) * 8)
    src_pad = jnp.zeros((seq_len, b_pad), jnp.int32).at[:, :batch].set(src)
    src_flat = src_pad.reshape(seq_len * b_pad, 1)     # time-major: row = t*b_pad + b

    flat_w = []
    for lp in layers:
        flat_w += [lp["w_ih_t"], lp["w_hh_t"], lp["b"]]

    kernel = functools.partial(_encoder_kernel, n_layers=n_layers, seq_len=seq_len,
                               batch_pad=b_pad, hid_dim=hid, input_dim=input_dim)
    vmem = pl.BlockSpec(memory_space=pltpu.MemorySpace.VMEM)
    hc = pl.pallas_call(
        kernel,
        out_shape=jax.ShapeDtypeStruct((n_layers, b_pad, 2 * hid), jnp.float32),
        in_specs=[vmem] * (2 + 3 * n_layers),
        out_specs=vmem,
        scratch_shapes=[pltpu.VMEM((seq_len * b_pad, hid), jnp.float32)],
        # Actual footprint is <200 KiB; a small explicit budget leaves scoped-VMEM
        # headroom for surrounding XLA fusions (v7x only has 64 MiB per TC).
        compiler_params=pltpu.CompilerParams(vmem_limit_bytes=4 * 1024 * 1024),
    )(src_flat, emb, *flat_w)

    hidden = hc[:, :batch, :hid]
    cell = hc[:, :batch, hid:]
    return hidden, cell


# ----------------------------------------------------------------------------
# Pure-JAX reference (for correctness check)
# ----------------------------------------------------------------------------
def _lstm_layer_ref(x, w_ih, w_hh, b_ih, b_hh):
    hid = w_hh.shape[1]
    batch = x.shape[1]

    def step(carry, xt):
        h, c = carry
        gates = xt @ w_ih.T + h @ w_hh.T + b_ih + b_hh
        i, f, g, o = jnp.split(gates, 4, axis=-1)
        i, f, g, o = jax.nn.sigmoid(i), jax.nn.sigmoid(f), jnp.tanh(g), jax.nn.sigmoid(o)
        c = f * c + i * g
        h = o * jnp.tanh(c)
        return (h, c), h

    init = (jnp.zeros((batch, hid), jnp.float32), jnp.zeros((batch, hid), jnp.float32))
    (h, c), outs = jax.lax.scan(step, init, x)
    return outs, h, c


def encoder_forward_ref(params, src):
    x = jnp.take(params["embedding"], src, axis=0)
    h_list, c_list = [], []
    for lp in params["layers"]:
        x, h_n, c_n = _lstm_layer_ref(x, lp["w_ih"], lp["w_hh"], lp["b_ih"], lp["b_hh"])
        h_list.append(h_n)
        c_list.append(c_n)
    return jnp.stack(h_list), jnp.stack(c_list)


if __name__ == "__main__":
    INPUT_DIM = 32     # vocab size
    EMB_DIM = 16
    HID_DIM = 32
    N_LAYERS = 2
    SEQ_LEN = 8
    BATCH = 2

    key = jax.random.PRNGKey(0)
    pkey, skey = jax.random.split(key)
    params = init_encoder_params(pkey, INPUT_DIM, EMB_DIM, HID_DIM, N_LAYERS)
    prepared = prepare_encoder_params(params)          # one-time weight prep
    src = jax.random.randint(skey, (SEQ_LEN, BATCH), 0, INPUT_DIM, dtype=jnp.int32)

    fwd = jax.jit(encoder_forward)
    hidden, cell = fwd(prepared, src)
    jax.block_until_ready((hidden, cell))

    hidden_ref, cell_ref = encoder_forward_ref(params, src)
    assert hidden.shape == (N_LAYERS, BATCH, HID_DIM)
    assert cell.shape == (N_LAYERS, BATCH, HID_DIM)
    assert jnp.allclose(hidden, hidden_ref, atol=1e-4, rtol=1e-4)
    assert jnp.allclose(cell, cell_ref, atol=1e-4, rtol=1e-4)

    print("KERNEL_OK")
</pallas_src>

<mosaic_0001>
module attributes {stable_mosaic.version = 11 : i64} {
  func.func @_encoder_kernel(%arg0: memref<64x1xi32, #tpu.memory_space<vmem>>, %arg1: memref<32x16xf32, #tpu.memory_space<vmem>>, %arg2: memref<16x128xf32, #tpu.memory_space<vmem>>, %arg3: memref<32x128xf32, #tpu.memory_space<vmem>>, %arg4: memref<1x128xf32, #tpu.memory_space<vmem>>, %arg5: memref<32x128xf32, #tpu.memory_space<vmem>>, %arg6: memref<32x128xf32, #tpu.memory_space<vmem>>, %arg7: memref<1x128xf32, #tpu.memory_space<vmem>>, %arg8: memref<2x8x64xf32, #tpu.memory_space<vmem>>, %arg9: memref<64x32xf32, #tpu.memory_space<vmem>>) attributes {dimension_semantics = [], scalar_prefetch = 0 : i64, scratch_operands = 1 : i64, tpu.core_type = #tpu.core_type<tc>} {
    %c0 = arith.constant 0 : index
    %c0_0 = arith.constant 0 : index
    %0 = vector.load %arg0[%c0, %c0_0] : memref<64x1xi32, #tpu.memory_space<vmem>>, vector<64x1xi32>
    %1 = tpu.iota {dimensions = array<i32: 1>} : vector<64x32xi32>
    %2 = vector.broadcast %0 : vector<64x1xi32> to vector<64x32xi32>
    %3 = arith.cmpi eq, %2, %1 : vector<64x32xi32>
    %cst = arith.constant 1.000000e+00 : f32
    %cst_1 = arith.constant 0.000000e+00 : f32
    %4 = vector.broadcast %cst : f32 to vector<64x32xf32>
    %5 = vector.broadcast %cst_1 : f32 to vector<64x32xf32>
    %6 = arith.select %3, %4, %5 : vector<64x32xi1>, vector<64x32xf32>
    %c0_2 = arith.constant 0 : index
    %c0_3 = arith.constant 0 : index
    %7 = vector.load %arg1[%c0_2, %c0_3] : memref<32x16xf32, #tpu.memory_space<vmem>>, vector<32x16xf32>
    %cst_4 = arith.constant dense<0.000000e+00> : vector<64x16xf32>
    %8 = tpu.matmul %6, %7, %cst_4 {dimension_numbers = #tpu.dot_dimension_numbers<[1], [0], [0], [1], [0, 0, 1, 1], [], []>} : vector<64x32xf32>, vector<32x16xf32>, vector<64x16xf32> -> vector<64x16xf32>
    %c0_5 = arith.constant 0 : index
    %c0_6 = arith.constant 0 : index
    %9 = vector.load %arg2[%c0_5, %c0_6] : memref<16x128xf32, #tpu.memory_space<vmem>>, vector<16x128xf32>
    %c0_7 = arith.constant 0 : index
    %c0_8 = arith.constant 0 : index
    %10 = vector.load %arg3[%c0_7, %c0_8] : memref<32x128xf32, #tpu.memory_space<vmem>>, vector<32x128xf32>
    %c0_9 = arith.constant 0 : index
    %c0_10 = arith.constant 0 : index
    %11 = vector.load %arg4[%c0_9, %c0_10] : memref<1x128xf32, #tpu.memory_space<vmem>>, vector<1x128xf32>
    %cst_11 = arith.constant dense<0.000000e+00> : vector<64x128xf32>
    %12 = tpu.matmul %8, %9, %cst_11 {dimension_numbers = #tpu.dot_dimension_numbers<[1], [0], [0], [1], [0, 0, 1, 1], [], []>} : vector<64x16xf32>, vector<16x128xf32>, vector<64x128xf32> -> vector<64x128xf32>
    %13 = vector.broadcast %11 : vector<1x128xf32> to vector<64x128xf32>
    %14 = arith.addf %12, %13 : vector<64x128xf32>
    %cst_12 = arith.constant 0.000000e+00 : f32
    %15 = vector.broadcast %cst_12 : f32 to vector<8x32xf32>
    %cst_13 = arith.constant 0.000000e+00 : f32
    %16 = vector.broadcast %cst_13 : f32 to vector<8x32xf32>
    %17 = vector.extract_strided_slice %14 {offsets = [0, 0], sizes = [8, 128], strides = [1, 1]} : vector<64x128xf32> to vector<8x128xf32>
    %cst_14 = arith.constant dense<0.000000e+00> : vector<8x128xf32>
    %18 = tpu.matmul %15, %10, %cst_14 {dimension_numbers = #tpu.dot_dimension_numbers<[1], [0], [0], [1], [0, 0, 1, 1], [], []>} : vector<8x32xf32>, vector<32x128xf32>, vector<8x128xf32> -> vector<8x128xf32>
    %19 = arith.addf %17, %18 : vector<8x128xf32>
    %20 = arith.negf %19 : vector<8x128xf32>
    %21 = math.exp %20 : vector<8x128xf32>
    %cst_15 = arith.constant 1.000000e+00 : f32
    %22 = vector.broadcast %cst_15 : f32 to vector<8x128xf32>
    %23 = arith.addf %22, %21 : vector<8x128xf32>
    %24 = arith.divf %22, %23 : vector<8x128xf32>
    %25 = math.tanh %19 : vector<8x128xf32>
    %26 = vector.extract_strided_slice %24 {offsets = [0, 0], sizes = [8, 32], strides = [1, 1]} : vector<8x128xf32> to vector<8x32xf32>
    %27 = vector.extract_strided_slice %24 {offsets = [0, 32], sizes = [8, 32], strides = [1, 1]} : vector<8x128xf32> to vector<8x32xf32>
    %28 = vector.extract_strided_slice %25 {offsets = [0, 64], sizes = [8, 32], strides = [1, 1]} : vector<8x128xf32> to vector<8x32xf32>
    %29 = vector.extract_strided_slice %24 {offsets = [0, 96], sizes = [8, 32], strides = [1, 1]} : vector<8x128xf32> to vector<8x32xf32>
    %30 = arith.mulf %27, %16 : vector<8x32xf32>
    %31 = arith.mulf %26, %28 : vector<8x32xf32>
    %32 = arith.addf %30, %31 : vector<8x32xf32>
    %33 = math.tanh %32 : vector<8x32xf32>
    %34 = arith.mulf %29, %33 : vector<8x32xf32>
    %c0_16 = arith.constant 0 : index
    %c0_17 = arith.constant 0 : index
    %35 = vector.load %arg9[%c0_16, %c0_17] : memref<64x32xf32, #tpu.memory_space<vmem>>, vector<8x32xf32>
    tpu.vector_store %arg9[%c0_16, %c0_17], %34 {strides = array<i32>} : memref<64x32xf32, #tpu.memory_space<vmem>>, vector<8x32xf32>,
    %36 = vector.extract_strided_slice %14 {offsets = [8, 0], sizes = [8, 128], strides = [1, 1]} : vector<64x128xf32> to vector<8x128xf32>
    %cst_18 = arith.constant dense<0.000000e+00> : vector<8x128xf32>
    %37 = tpu.matmul %34, %10, %cst_18 {dimension_numbers = #tpu.dot_dimension_numbers<[1], [0], [0], [1], [0, 0, 1, 1], [], []>} : vector<8x32xf32>, vector<32x128xf32>, vector<8x128xf32> -> vector<8x128xf32>
    %38 = arith.addf %36, %37 : vector<8x128xf32>
    %39 = arith.negf %38 : vector<8x128xf32>
    %40 = math.exp %39 : vector<8x128xf32>
    %cst_19 = arith.constant 1.000000e+00 : f32
    %41 = vector.broadcast %cst_19 : f32 to vector<8x128xf32>
    %42 = arith.addf %41, %40 : vector<8x128xf32>
    %43 = arith.divf %41, %42 : vector<8x128xf32>
    %44 = math.tanh %38 : vector<8x128xf32>
    %45 = vector.extract_strided_slice %43 {offsets = [0, 0], sizes = [8, 32], strides = [1, 1]} : vector<8x128xf32> to vector<8x32xf32>
    %46 = vector.extract_strided_slice %43 {offsets = [0, 32], sizes = [8, 32], strides = [1, 1]} : vector<8x128xf32> to vector<8x32xf32>
    %47 = vector.extract_strided_slice %44 {offsets = [0, 64], sizes = [8, 32], strides = [1, 1]} : vector<8x128xf32> to vector<8x32xf32>
    %48 = vector.extract_strided_slice %43 {offsets = [0, 96], sizes = [8, 32], strides = [1, 1]} : vector<8x128xf32> to vector<8x32xf32>
    %49 = arith.mulf %46, %32 : vector<8x32xf32>
    %50 = arith.mulf %45, %47 : vector<8x32xf32>
    %51 = arith.addf %49, %50 : vector<8x32xf32>
    %52 = math.tanh %51 : vector<8x32xf32>
    %53 = arith.mulf %48, %52 : vector<8x32xf32>
    %c8 = arith.constant 8 : index
    %c0_20 = arith.constant 0 : index
    %54 = vector.load %arg9[%c8, %c0_20] : memref<64x32xf32, #tpu.memory_space<vmem>>, vector<8x32xf32>
    tpu.vector_store %arg9[%c8, %c0_20], %53 {strides = array<i32>} : memref<64x32xf32, #tpu.memory_space<vmem>>, vector<8x32xf32>,
    %55 = vector.extract_strided_slice %14 {offsets = [16, 0], sizes = [8, 128], strides = [1, 1]} : vector<64x128xf32> to vector<8x128xf32>
    %cst_21 = arith.constant dense<0.000000e+00> : vector<8x128xf32>
    %56 = tpu.matmul %53, %10, %cst_21 {dimension_numbers = #tpu.dot_dimension_numbers<[1], [0], [0], [1], [0, 0, 1, 1], [], []>} : vector<8x32xf32>, vector<32x128xf32>, vector<8x128xf32> -> vector<8x128xf32>
    %57 = arith.addf %55, %56 : vector<8x128xf32>
    %58 = arith.negf %57 : vector<8x128xf32>
    %59 = math.exp %58 : vector<8x128xf32>
    %cst_22 = arith.constant 1.000000e+00 : f32
    %60 = vector.broadcast %cst_22 : f32 to vector<8x128xf32>
    %61 = arith.addf %60, %59 : vector<8x128xf32>
    %62 = arith.divf %60, %61 : vector<8x128xf32>
    %63 = math.tanh %57 : vector<8x128xf32>
    %64 = vector.extract_strided_slice %62 {offsets = [0, 0], sizes = [8, 32], strides = [1, 1]} : vector<8x128xf32> to vector<8x32xf32>
    %65 = vector.extract_strided_slice %62 {offsets = [0, 32], sizes = [8, 32], strides = [1, 1]} : vector<8x128xf32> to vector<8x32xf32>
    %66 = vector.extract_strided_slice %63 {offsets = [0, 64], sizes = [8, 32], strides = [1, 1]} : vector<8x128xf32> to vector<8x32xf32>
    %67 = vector.extract_strided_slice %62 {offsets = [0, 96], sizes = [8, 32], strides = [1, 1]} : vector<8x128xf32> to vector<8x32xf32>
    %68 = arith.mulf %65, %51 : vector<8x32xf32>
    %69 = arith.mulf %64, %66 : vector<8x32xf32>
    %70 = arith.addf %68, %69 : vector<8x32xf32>
    %71 = math.tanh %70 : vector<8x32xf32>
    %72 = arith.mulf %67, %71 : vector<8x32xf32>
    %c16 = arith.constant 16 : index
    %c0_23 = arith.constant 0 : index
    %73 = vector.load %arg9[%c16, %c0_23] : memref<64x32xf32, #tpu.memory_space<vmem>>, vector<8x32xf32>
    tpu.vector_store %arg9[%c16, %c0_23], %72 {strides = array<i32>} : memref<64x32xf32, #tpu.memory_space<vmem>>, vector<8x32xf32>,
    %74 = vector.extract_strided_slice %14 {offsets = [24, 0], sizes = [8, 128], strides = [1, 1]} : vector<64x128xf32> to vector<8x128xf32>
    %cst_24 = arith.constant dense<0.000000e+00> : vector<8x128xf32>
    %75 = tpu.matmul %72, %10, %cst_24 {dimension_numbers = #tpu.dot_dimension_numbers<[1], [0], [0], [1], [0, 0, 1, 1], [], []>} : vector<8x32xf32>, vector<32x128xf32>, vector<8x128xf32> -> vector<8x128xf32>
    %76 = arith.addf %74, %75 : vector<8x128xf32>
    %77 = arith.negf %76 : vector<8x128xf32>
    %78 = math.exp %77 : vector<8x128xf32>
    %cst_25 = arith.constant 1.000000e+00 : f32
    %79 = vector.broadcast %cst_25 : f32 to vector<8x128xf32>
    %80 = arith.addf %79, %78 : vector<8x128xf32>
    %81 = arith.divf %79, %80 : vector<8x128xf32>
    %82 = math.tanh %76 : vector<8x128xf32>
    %83 = vector.extract_strided_slice %81 {offsets = [0, 0], sizes = [8, 32], strides = [1, 1]} : vector<8x128xf32> to vector<8x32xf32>
    %84 = vector.extract_strided_slice %81 {offsets = [0, 32], sizes = [8, 32], strides = [1, 1]} : vector<8x128xf32> to vector<8x32xf32>
    %85 = vector.extract_strided_slice %82 {offsets = [0, 64], sizes = [8, 32], strides = [1, 1]} : vector<8x128xf32> to vector<8x32xf32>
    %86 = vector.extract_strided_slice %81 {offsets = [0, 96], sizes = [8, 32], strides = [1, 1]} : vector<8x128xf32> to vector<8x32xf32>
    %87 = arith.mulf %84, %70 : vector<8x32xf32>
    %88 = arith.mulf %83, %85 : vector<8x32xf32>
    %89 = arith.addf %87, %88 : vector<8x32xf32>
    %90 = math.tanh %89 : vector<8x32xf32>
    %91 = arith.mulf %86, %90 : vector<8x32xf32>
    %c24 = arith.constant 24 : index
    %c0_26 = arith.constant 0 : index
    %92 = vector.load %arg9[%c24, %c0_26] : memref<64x32xf32, #tpu.memory_space<vmem>>, vector<8x32xf32>
    tpu.vector_store %arg9[%c24, %c0_26], %91 {strides = array<i32>} : memref<64x32xf32, #tpu.memory_space<vmem>>, vector<8x32xf32>,
    %93 = vector.extract_strided_slice %14 {offsets = [32, 0], sizes = [8, 128], strides = [1, 1]} : vector<64x128xf32> to vector<8x128xf32>
    %cst_27 = arith.constant dense<0.000000e+00> : vector<8x128xf32>
    %94 = tpu.matmul %91, %10, %cst_27 {dimension_numbers = #tpu.dot_dimension_numbers<[1], [0], [0], [1], [0, 0, 1, 1], [], []>} : vector<8x32xf32>, vector<32x128xf32>, vector<8x128xf32> -> vector<8x128xf32>
    %95 = arith.addf %93, %94 : vector<8x128xf32>
    %96 = arith.negf %95 : vector<8x128xf32>
    %97 = math.exp %96 : vector<8x128xf32>
    %cst_28 = arith.constant 1.000000e+00 : f32
    %98 = vector.broadcast %cst_28 : f32 to vector<8x128xf32>
    %99 = arith.addf %98, %97 : vector<8x128xf32>
    %100 = arith.divf %98, %99 : vector<8x128xf32>
    %101 = math.tanh %95 : vector<8x128xf32>
    %102 = vector.extract_strided_slice %100 {offsets = [0, 0], sizes = [8, 32], strides = [1, 1]} : vector<8x128xf32> to vector<8x32xf32>
    %103 = vector.extract_strided_slice %100 {offsets = [0, 32], sizes = [8, 32], strides = [1, 1]} : vector<8x128xf32> to vector<8x32xf32>
    %104 = vector.extract_strided_slice %101 {offsets = [0, 64], sizes = [8, 32], strides = [1, 1]} : vector<8x128xf32> to vector<8x32xf32>
    %105 = vector.extract_strided_slice %100 {offsets = [0, 96], sizes = [8, 32], strides = [1, 1]} : vector<8x128xf32> to vector<8x32xf32>
    %106 = arith.mulf %103, %89 : vector<8x32xf32>
    %107 = arith.mulf %102, %104 : vector<8x32xf32>
    %108 = arith.addf %106, %107 : vector<8x32xf32>
    %109 = math.tanh %108 : vector<8x32xf32>
    %110 = arith.mulf %105, %109 : vector<8x32xf32>
    %c32 = arith.constant 32 : index
    %c0_29 = arith.constant 0 : index
    %111 = vector.load %arg9[%c32, %c0_29] : memref<64x32xf32, #tpu.memory_space<vmem>>, vector<8x32xf32>
    tpu.vector_store %arg9[%c32, %c0_29], %110 {strides = array<i32>} : memref<64x32xf32, #tpu.memory_space<vmem>>, vector<8x32xf32>,
    %112 = vector.extract_strided_slice %14 {offsets = [40, 0], sizes = [8, 128], strides = [1, 1]} : vector<64x128xf32> to vector<8x128xf32>
    %cst_30 = arith.constant dense<0.000000e+00> : vector<8x128xf32>
    %113 = tpu.matmul %110, %10, %cst_30 {dimension_numbers = #tpu.dot_dimension_numbers<[1], [0], [0], [1], [0, 0, 1, 1], [], []>} : vector<8x32xf32>, vector<32x128xf32>, vector<8x128xf32> -> vector<8x128xf32>
    %114 = arith.addf %112, %113 : vector<8x128xf32>
    %115 = arith.negf %114 : vector<8x128xf32>
    %116 = math.exp %115 : vector<8x128xf32>
    %cst_31 = arith.constant 1.000000e+00 : f32
    %117 = vector.broadcast %cst_31 : f32 to vector<8x128xf32>
    %118 = arith.addf %117, %116 : vector<8x128xf32>
    %119 = arith.divf %117, %118 : vector<8x128xf32>
    %120 = math.tanh %114 : vector<8x128xf32>
    %121 = vector.extract_strided_slice %119 {offsets = [0, 0], sizes = [8, 32], strides = [1, 1]} : vector<8x128xf32> to vector<8x32xf32>
    %122 = vector.extract_strided_slice %119 {offsets = [0, 32], sizes = [8, 32], strides = [1, 1]} : vector<8x128xf32> to vector<8x32xf32>
    %123 = vector.extract_strided_slice %120 {offsets = [0, 64], sizes = [8, 32], strides = [1, 1]} : vector<8x128xf32> to vector<8x32xf32>
    %124 = vector.extract_strided_slice %119 {offsets = [0, 96], sizes = [8, 32], strides = [1, 1]} : vector<8x128xf32> to vector<8x32xf32>
    %125 = arith.mulf %122, %108 : vector<8x32xf32>
    %126 = arith.mulf %121, %123 : vector<8x32xf32>
    %127 = arith.addf %125, %126 : vector<8x32xf32>
    %128 = math.tanh %127 : vector<8x32xf32>
    %129 = arith.mulf %124, %128 : vector<8x32xf32>
    %c40 = arith.constant 40 : index
    %c0_32 = arith.constant 0 : index
    %130 = vector.load %arg9[%c40, %c0_32] : memref<64x32xf32, #tpu.memory_space<vmem>>, vector<8x32xf32>
    tpu.vector_store %arg9[%c40, %c0_32], %129 {strides = array<i32>} : memref<64x32xf32, #tpu.memory_space<vmem>>, vector<8x32xf32>,
    %131 = vector.extract_strided_slice %14 {offsets = [48, 0], sizes = [8, 128], strides = [1, 1]} : vector<64x128xf32> to vector<8x128xf32>
    %cst_33 = arith.constant dense<0.000000e+00> : vector<8x128xf32>
    %132 = tpu.matmul %129, %10, %cst_33 {dimension_numbers = #tpu.dot_dimension_numbers<[1], [0], [0], [1], [0, 0, 1, 1], [], []>} : vector<8x32xf32>, vector<32x128xf32>, vector<8x128xf32> -> vector<8x128xf32>
    %133 = arith.addf %131, %132 : vector<8x128xf32>
    %134 = arith.negf %133 : vector<8x128xf32>
    %135 = math.exp %134 : vector<8x128xf32>
    %cst_34 = arith.constant 1.000000e+00 : f32
    %136 = vector.broadcast %cst_34 : f32 to vector<8x128xf32>
    %137 = arith.addf %136, %135 : vector<8x128xf32>
    %138 = arith.divf %136, %137 : vector<8x128xf32>
    %139 = math.tanh %133 : vector<8x128xf32>
    %140 = vector.extract_strided_slice %138 {offsets = [0, 0], sizes = [8, 32], strides = [1, 1]} : vector<8x128xf32> to vector<8x32xf32>
    %141 = vector.extract_strided_slice %138 {offsets = [0, 32], sizes = [8, 32], strides = [1, 1]} : vector<8x128xf32> to vector<8x32xf32>
    %142 = vector.extract_strided_slice %139 {offsets = [0, 64], sizes = [8, 32], strides = [1, 1]} : vector<8x128xf32> to vector<8x32xf32>
    %143 = vector.extract_strided_slice %138 {offsets = [0, 96], sizes = [8, 32], strides = [1, 1]} : vector<8x128xf32> to vector<8x32xf32>
    %144 = arith.mulf %141, %127 : vector<8x32xf32>
    %145 = arith.mulf %140, %142 : vector<8x32xf32>
    %146 = arith.addf %144, %145 : vector<8x32xf32>
    %147 = math.tanh %146 : vector<8x32xf32>
    %148 = arith.mulf %143, %147 : vector<8x32xf32>
    %c48 = arith.constant 48 : index
    %c0_35 = arith.constant 0 : index
    %149 = vector.load %arg9[%c48, %c0_35] : memref<64x32xf32, #tpu.memory_space<vmem>>, vector<8x32xf32>
    tpu.vector_store %arg9[%c48, %c0_35], %148 {strides = array<i32>} : memref<64x32xf32, #tpu.memory_space<vmem>>, vector<8x32xf32>,
    %150 = vector.extract_strided_slice %14 {offsets = [56, 0], sizes = [8, 128], strides = [1, 1]} : vector<64x128xf32> to vector<8x128xf32>
    %cst_36 = arith.constant dense<0.000000e+00> : vector<8x128xf32>
    %151 = tpu.matmul %148, %10, %cst_36 {dimension_numbers = #tpu.dot_dimension_numbers<[1], [0], [0], [1], [0, 0, 1, 1], [], []>} : vector<8x32xf32>, vector<32x128xf32>, vector<8x128xf32> -> vector<8x128xf32>
    %152 = arith.addf %150, %151 : vector<8x128xf32>
    %153 = arith.negf %152 : vector<8x128xf32>
    %154 = math.exp %153 : vector<8x128xf32>
    %cst_37 = arith.constant 1.000000e+00 : f32
    %155 = vector.broadcast %cst_37 : f32 to vector<8x128xf32>
    %156 = arith.addf %155, %154 : vector<8x128xf32>
    %157 = arith.divf %155, %156 : vector<8x128xf32>
    %158 = math.tanh %152 : vector<8x128xf32>
    %159 = vector.extract_strided_slice %157 {offsets = [0, 0], sizes = [8, 32], strides = [1, 1]} : vector<8x128xf32> to vector<8x32xf32>
    %160 = vector.extract_strided_slice %157 {offsets = [0, 32], sizes = [8, 32], strides = [1, 1]} : vector<8x128xf32> to vector<8x32xf32>
    %161 = vector.extract_strided_slice %158 {offsets = [0, 64], sizes = [8, 32], strides = [1, 1]} : vector<8x128xf32> to vector<8x32xf32>
    %162 = vector.extract_strided_slice %157 {offsets = [0, 96], sizes = [8, 32], strides = [1, 1]} : vector<8x128xf32> to vector<8x32xf32>
    %163 = arith.mulf %160, %146 : vector<8x32xf32>
    %164 = arith.mulf %159, %161 : vector<8x32xf32>
    %165 = arith.addf %163, %164 : vector<8x32xf32>
    %166 = math.tanh %165 : vector<8x32xf32>
    %167 = arith.mulf %162, %166 : vector<8x32xf32>
    %c56 = arith.constant 56 : index
    %c0_38 = arith.constant 0 : index
    %168 = vector.load %arg9[%c56, %c0_38] : memref<64x32xf32, #tpu.memory_space<vmem>>, vector<8x32xf32>
    tpu.vector_store %arg9[%c56, %c0_38], %167 {strides = array<i32>} : memref<64x32xf32, #tpu.memory_space<vmem>>, vector<8x32xf32>,
    %169 = tpu.concatenate %167, %165 in 1 : vector<8x32xf32>, vector<8x32xf32> -> vector<8x64xf32>
    %c0_39 = arith.constant 0 : index
    %c0_40 = arith.constant 0 : index
    %c0_41 = arith.constant 0 : index
    %170 = vector.load %arg8[%c0_39, %c0_40, %c0_41] : memref<2x8x64xf32, #tpu.memory_space<vmem>>, vector<1x8x64xf32>
    %171 = vector.shape_cast %170 : vector<1x8x64xf32> to vector<8x64xf32>
    %172 = vector.shape_cast %169 : vector<8x64xf32> to vector<1x8x64xf32>
    tpu.vector_store %arg8[%c0_39, %c0_40, %c0_41], %172 {strides = array<i32>} : memref<2x8x64xf32, #tpu.memory_space<vmem>>, vector<1x8x64xf32>,
    %c0_42 = arith.constant 0 : index
    %c0_43 = arith.constant 0 : index
    %173 = vector.load %arg5[%c0_42, %c0_43] : memref<32x128xf32, #tpu.memory_space<vmem>>, vector<32x128xf32>
    %c0_44 = arith.constant 0 : index
    %c0_45 = arith.constant 0 : index
    %174 = vector.load %arg6[%c0_44, %c0_45] : memref<32x128xf32, #tpu.memory_space<vmem>>, vector<32x128xf32>
    %c0_46 = arith.constant 0 : index
    %c0_47 = arith.constant 0 : index
    %175 = vector.load %arg7[%c0_46, %c0_47] : memref<1x128xf32, #tpu.memory_space<vmem>>, vector<1x128xf32>
    %c0_48 = arith.constant 0 : index
    %c0_49 = arith.constant 0 : index
    %176 = vector.load %arg9[%c0_48, %c0_49] : memref<64x32xf32, #tpu.memory_space<vmem>>, vector<64x32xf32>
    %cst_50 = arith.constant dense<0.000000e+00> : vector<64x128xf32>
    %177 = tpu.matmul %176, %173, %cst_50 {dimension_numbers = #tpu.dot_dimension_numbers<[1], [0], [0], [1], [0, 0, 1, 1], [], []>} : vector<64x32xf32>, vector<32x128xf32>, vector<64x128xf32> -> vector<64x128xf32>
    %178 = vector.broadcast %175 : vector<1x128xf32> to vector<64x128xf32>
    %179 = arith.addf %177, %178 : vector<64x128xf32>
    %cst_51 = arith.constant 0.000000e+00 : f32
    %180 = vector.broadcast %cst_51 : f32 to vector<8x32xf32>
    %cst_52 = arith.constant 0.000000e+00 : f32
    %181 = vector.broadcast %cst_52 : f32 to vector<8x32xf32>
    %182 = vector.extract_strided_slice %179 {offsets = [0, 0], sizes = [8, 128], strides = [1, 1]} : vector<64x128xf32> to vector<8x128xf32>
    %cst_53 = arith.constant dense<0.000000e+00> : vector<8x128xf32>
    %183 = tpu.matmul %180, %174, %cst_53 {dimension_numbers = #tpu.dot_dimension_numbers<[1], [0], [0], [1], [0, 0, 1, 1], [], []>} : vector<8x32xf32>, vector<32x128xf32>, vector<8x128xf32> -> vector<8x128xf32>
    %184 = arith.addf %182, %183 : vector<8x128xf32>
    %185 = arith.negf %184 : vector<8x128xf32>
    %186 = math.exp %185 : vector<8x128xf32>
    %cst_54 = arith.constant 1.000000e+00 : f32
    %187 = vector.broadcast %cst_54 : f32 to vector<8x128xf32>
    %188 = arith.addf %187, %186 : vector<8x128xf32>
    %189 = arith.divf %187, %188 : vector<8x128xf32>
    %190 = math.tanh %184 : vector<8x128xf32>
    %191 = vector.extract_strided_slice %189 {offsets = [0, 0], sizes = [8, 32], strides = [1, 1]} : vector<8x128xf32> to vector<8x32xf32>
    %192 = vector.extract_strided_slice %189 {offsets = [0, 32], sizes = [8, 32], strides = [1, 1]} : vector<8x128xf32> to vector<8x32xf32>
    %193 = vector.extract_strided_slice %190 {offsets = [0, 64], sizes = [8, 32], strides = [1, 1]} : vector<8x128xf32> to vector<8x32xf32>
    %194 = vector.extract_strided_slice %189 {offsets = [0, 96], sizes = [8, 32], strides = [1, 1]} : vector<8x128xf32> to vector<8x32xf32>
    %195 = arith.mulf %192, %181 : vector<8x32xf32>
    %196 = arith.mulf %191, %193 : vector<8x32xf32>
    %197 = arith.addf %195, %196 : vector<8x32xf32>
    %198 = math.tanh %197 : vector<8x32xf32>
    %199 = arith.mulf %194, %198 : vector<8x32xf32>
    %200 = vector.extract_strided_slice %179 {offsets = [8, 0], sizes = [8, 128], strides = [1, 1]} : vector<64x128xf32> to vector<8x128xf32>
    %cst_55 = arith.constant dense<0.000000e+00> : vector<8x128xf32>
    %201 = tpu.matmul %199, %174, %cst_55 {dimension_numbers = #tpu.dot_dimension_numbers<[1], [0], [0], [1], [0, 0, 1, 1], [], []>} : vector<8x32xf32>, vector<32x128xf32>, vector<8x128xf32> -> vector<8x128xf32>
    %202 = arith.addf %200, %201 : vector<8x128xf32>
    %203 = arith.negf %202 : vector<8x128xf32>
    %204 = math.exp %203 : vector<8x128xf32>
    %cst_56 = arith.constant 1.000000e+00 : f32
    %205 = vector.broadcast %cst_56 : f32 to vector<8x128xf32>
    %206 = arith.addf %205, %204 : vector<8x128xf32>
    %207 = arith.divf %205, %206 : vector<8x128xf32>
    %208 = math.tanh %202 : vector<8x128xf32>
    %209 = vector.extract_strided_slice %207 {offsets = [0, 0], sizes = [8, 32], strides = [1, 1]} : vector<8x128xf32> to vector<8x32xf32>
    %210 = vector.extract_strided_slice %207 {offsets = [0, 32], sizes = [8, 32], strides = [1, 1]} : vector<8x128xf32> to vector<8x32xf32>
    %211 = vector.extract_strided_slice %208 {offsets = [0, 64], sizes = [8, 32], strides = [1, 1]} : vector<8x128xf32> to vector<8x32xf32>
    %212 = vector.extract_strided_slice %207 {offsets = [0, 96], sizes = [8, 32], strides = [1, 1]} : vector<8x128xf32> to vector<8x32xf32>
    %213 = arith.mulf %210, %197 : vector<8x32xf32>
    %214 = arith.mulf %209, %211 : vector<8x32xf32>
    %215 = arith.addf %213, %214 : vector<8x32xf32>
    %216 = math.tanh %215 : vector<8x32xf32>
    %217 = arith.mulf %212, %216 : vector<8x32xf32>
    %218 = vector.extract_strided_slice %179 {offsets = [16, 0], sizes = [8, 128], strides = [1, 1]} : vector<64x128xf32> to vector<8x128xf32>
    %cst_57 = arith.constant dense<0.000000e+00> : vector<8x128xf32>
    %219 = tpu.matmul %217, %174, %cst_57 {dimension_numbers = #tpu.dot_dimension_numbers<[1], [0], [0], [1], [0, 0, 1, 1], [], []>} : vector<8x32xf32>, vector<32x128xf32>, vector<8x128xf32> -> vector<8x128xf32>
    %220 = arith.addf %218, %219 : vector<8x128xf32>
    %221 = arith.negf %220 : vector<8x128xf32>
    %222 = math.exp %221 : vector<8x128xf32>
    %cst_58 = arith.constant 1.000000e+00 : f32
    %223 = vector.broadcast %cst_58 : f32 to vector<8x128xf32>
    %224 = arith.addf %223, %222 : vector<8x128xf32>
    %225 = arith.divf %223, %224 : vector<8x128xf32>
    %226 = math.tanh %220 : vector<8x128xf32>
    %227 = vector.extract_strided_slice %225 {offsets = [0, 0], sizes = [8, 32], strides = [1, 1]} : vector<8x128xf32> to vector<8x32xf32>
    %228 = vector.extract_strided_slice %225 {offsets = [0, 32], sizes = [8, 32], strides = [1, 1]} : vector<8x128xf32> to vector<8x32xf32>
    %229 = vector.extract_strided_slice %226 {offsets = [0, 64], sizes = [8, 32], strides = [1, 1]} : vector<8x128xf32> to vector<8x32xf32>
    %230 = vector.extract_strided_slice %225 {offsets = [0, 96], sizes = [8, 32], strides = [1, 1]} : vector<8x128xf32> to vector<8x32xf32>
    %231 = arith.mulf %228, %215 : vector<8x32xf32>
    %232 = arith.mulf %227, %229 : vector<8x32xf32>
    %233 = arith.addf %231, %232 : vector<8x32xf32>
    %234 = math.tanh %233 : vector<8x32xf32>
    %235 = arith.mulf %230, %234 : vector<8x32xf32>
    %236 = vector.extract_strided_slice %179 {offsets = [24, 0], sizes = [8, 128], strides = [1, 1]} : vector<64x128xf32> to vector<8x128xf32>
    %cst_59 = arith.constant dense<0.000000e+00> : vector<8x128xf32>
    %237 = tpu.matmul %235, %174, %cst_59 {dimension_numbers = #tpu.dot_dimension_numbers<[1], [0], [0], [1], [0, 0, 1, 1], [], []>} : vector<8x32xf32>, vector<32x128xf32>, vector<8x128xf32> -> vector<8x128xf32>
    %238 = arith.addf %236, %237 : vector<8x128xf32>
    %239 = arith.negf %238 : vector<8x128xf32>
    %240 = math.exp %239 : vector<8x128xf32>
    %cst_60 = arith.constant 1.000000e+00 : f32
    %241 = vector.broadcast %cst_60 : f32 to vector<8x128xf32>
    %242 = arith.addf %241, %240 : vector<8x128xf32>
    %243 = arith.divf %241, %242 : vector<8x128xf32>
    %244 = math.tanh %238 : vector<8x128xf32>
    %245 = vector.extract_strided_slice %243 {offsets = [0, 0], sizes = [8, 32], strides = [1, 1]} : vector<8x128xf32> to vector<8x32xf32>
    %246 = vector.extract_strided_slice %243 {offsets = [0, 32], sizes = [8, 32], strides = [1, 1]} : vector<8x128xf32> to vector<8x32xf32>
    %247 = vector.extract_strided_slice %244 {offsets = [0, 64], sizes = [8, 32], strides = [1, 1]} : vector<8x128xf32> to vector<8x32xf32>
    %248 = vector.extract_strided_slice %243 {offsets = [0, 96], sizes = [8, 32], strides = [1, 1]} : vector<8x128xf32> to vector<8x32xf32>
    %249 = arith.mulf %246, %233 : vector<8x32xf32>
    %250 = arith.mulf %245, %247 : vector<8x32xf32>
    %251 = arith.addf %249, %250 : vector<8x32xf32>
    %252 = math.tanh %251 : vector<8x32xf32>
    %253 = arith.mulf %248, %252 : vector<8x32xf32>
    %254 = vector.extract_strided_slice %179 {offsets = [32, 0], sizes = [8, 128], strides = [1, 1]} : vector<64x128xf32> to vector<8x128xf32>
    %cst_61 = arith.constant dense<0.000000e+00> : vector<8x128xf32>
    %255 = tpu.matmul %253, %174, %cst_61 {dimension_numbers = #tpu.dot_dimension_numbers<[1], [0], [0], [1], [0, 0, 1, 1], [], []>} : vector<8x32xf32>, vector<32x128xf32>, vector<8x128xf32> -> vector<8x128xf32>
    %256 = arith.addf %254, %255 : vector<8x128xf32>
    %257 = arith.negf %256 : vector<8x128xf32>
    %258 = math.exp %257 : vector<8x128xf32>
    %cst_62 = arith.constant 1.000000e+00 : f32
    %259 = vector.broadcast %cst_62 : f32 to vector<8x128xf32>
    %260 = arith.addf %259, %258 : vector<8x128xf32>
    %261 = arith.divf %259, %260 : vector<8x128xf32>
    %262 = math.tanh %256 : vector<8x128xf32>
    %263 = vector.extract_strided_slice %261 {offsets = [0, 0], sizes = [8, 32], strides = [1, 1]} : vector<8x128xf32> to vector<8x32xf32>
    %264 = vector.extract_strided_slice %261 {offsets = [0, 32], sizes = [8, 32], strides = [1, 1]} : vector<8x128xf32> to vector<8x32xf32>
    %265 = vector.extract_strided_slice %262 {offsets = [0, 64], sizes = [8, 32], strides = [1, 1]} : vector<8x128xf32> to vector<8x32xf32>
    %266 = vector.extract_strided_slice %261 {offsets = [0, 96], sizes = [8, 32], strides = [1, 1]} : vector<8x128xf32> to vector<8x32xf32>
    %267 = arith.mulf %264, %251 : vector<8x32xf32>
    %268 = arith.mulf %263, %265 : vector<8x32xf32>
    %269 = arith.addf %267, %268 : vector<8x32xf32>
    %270 = math.tanh %269 : vector<8x32xf32>
    %271 = arith.mulf %266, %270 : vector<8x32xf32>
    %272 = vector.extract_strided_slice %179 {offsets = [40, 0], sizes = [8, 128], strides = [1, 1]} : vector<64x128xf32> to vector<8x128xf32>
    %cst_63 = arith.constant dense<0.000000e+00> : vector<8x128xf32>
    %273 = tpu.matmul %271, %174, %cst_63 {dimension_numbers = #tpu.dot_dimension_numbers<[1], [0], [0], [1], [0, 0, 1, 1], [], []>} : vector<8x32xf32>, vector<32x128xf32>, vector<8x128xf32> -> vector<8x128xf32>
    %274 = arith.addf %272, %273 : vector<8x128xf32>
    %275 = arith.negf %274 : vector<8x128xf32>
    %276 = math.exp %275 : vector<8x128xf32>
    %cst_64 = arith.constant 1.000000e+00 : f32
    %277 = vector.broadcast %cst_64 : f32 to vector<8x128xf32>
    %278 = arith.addf %277, %276 : vector<8x128xf32>
    %279 = arith.divf %277, %278 : vector<8x128xf32>
    %280 = math.tanh %274 : vector<8x128xf32>
    %281 = vector.extract_strided_slice %279 {offsets = [0, 0], sizes = [8, 32], strides = [1, 1]} : vector<8x128xf32> to vector<8x32xf32>
    %282 = vector.extract_strided_slice %279 {offsets = [0, 32], sizes = [8, 32], strides = [1, 1]} : vector<8x128xf32> to vector<8x32xf32>
    %283 = vector.extract_strided_slice %280 {offsets = [0, 64], sizes = [8, 32], strides = [1, 1]} : vector<8x128xf32> to vector<8x32xf32>
    %284 = vector.extract_strided_slice %279 {offsets = [0, 96], sizes = [8, 32], strides = [1, 1]} : vector<8x128xf32> to vector<8x32xf32>
    %285 = arith.mulf %282, %269 : vector<8x32xf32>
    %286 = arith.mulf %281, %283 : vector<8x32xf32>
    %287 = arith.addf %285, %286 : vector<8x32xf32>
    %288 = math.tanh %287 : vector<8x32xf32>
    %289 = arith.mulf %284, %288 : vector<8x32xf32>
    %290 = vector.extract_strided_slice %179 {offsets = [48, 0], sizes = [8, 128], strides = [1, 1]} : vector<64x128xf32> to vector<8x128xf32>
    %cst_65 = arith.constant dense<0.000000e+00> : vector<8x128xf32>
    %291 = tpu.matmul %289, %174, %cst_65 {dimension_numbers = #tpu.dot_dimension_numbers<[1], [0], [0], [1], [0, 0, 1, 1], [], []>} : vector<8x32xf32>, vector<32x128xf32>, vector<8x128xf32> -> vector<8x128xf32>
    %292 = arith.addf %290, %291 : vector<8x128xf32>
    %293 = arith.negf %292 : vector<8x128xf32>
    %294 = math.exp %293 : vector<8x128xf32>
    %cst_66 = arith.constant 1.000000e+00 : f32
    %295 = vector.broadcast %cst_66 : f32 to vector<8x128xf32>
    %296 = arith.addf %295, %294 : vector<8x128xf32>
    %297 = arith.divf %295, %296 : vector<8x128xf32>
    %298 = math.tanh %292 : vector<8x128xf32>
    %299 = vector.extract_strided_slice %297 {offsets = [0, 0], sizes = [8, 32], strides = [1, 1]} : vector<8x128xf32> to vector<8x32xf32>
    %300 = vector.extract_strided_slice %297 {offsets = [0, 32], sizes = [8, 32], strides = [1, 1]} : vector<8x128xf32> to vector<8x32xf32>
    %301 = vector.extract_strided_slice %298 {offsets = [0, 64], sizes = [8, 32], strides = [1, 1]} : vector<8x128xf32> to vector<8x32xf32>
    %302 = vector.extract_strided_slice %297 {offsets = [0, 96], sizes = [8, 32], strides = [1, 1]} : vector<8x128xf32> to vector<8x32xf32>
    %303 = arith.mulf %300, %287 : vector<8x32xf32>
    %304 = arith.mulf %299, %301 : vector<8x32xf32>
    %305 = arith.addf %303, %304 : vector<8x32xf32>
    %306 = math.tanh %305 : vector<8x32xf32>
    %307 = arith.mulf %302, %306 : vector<8x32xf32>
    %308 = vector.extract_strided_slice %179 {offsets = [56, 0], sizes = [8, 128], strides = [1, 1]} : vector<64x128xf32> to vector<8x128xf32>
    %cst_67 = arith.constant dense<0.000000e+00> : vector<8x128xf32>
    %309 = tpu.matmul %307, %174, %cst_67 {dimension_numbers = #tpu.dot_dimension_numbers<[1], [0], [0], [1], [0, 0, 1, 1], [], []>} : vector<8x32xf32>, vector<32x128xf32>, vector<8x128xf32> -> vector<8x128xf32>
    %310 = arith.addf %308, %309 : vector<8x128xf32>
    %311 = arith.negf %310 : vector<8x128xf32>
    %312 = math.exp %311 : vector<8x128xf32>
    %cst_68 = arith.constant 1.000000e+00 : f32
    %313 = vector.broadcast %cst_68 : f32 to vector<8x128xf32>
    %314 = arith.addf %313, %312 : vector<8x128xf32>
    %315 = arith.divf %313, %314 : vector<8x128xf32>
    %316 = math.tanh %310 : vector<8x128xf32>
    %317 = vector.extract_strided_slice %315 {offsets = [0, 0], sizes = [8, 32], strides = [1, 1]} : vector<8x128xf32> to vector<8x32xf32>
    %318 = vector.extract_strided_slice %315 {offsets = [0, 32], sizes = [8, 32], strides = [1, 1]} : vector<8x128xf32> to vector<8x32xf32>
    %319 = vector.extract_strided_slice %316 {offsets = [0, 64], sizes = [8, 32], strides = [1, 1]} : vector<8x128xf32> to vector<8x32xf32>
    %320 = vector.extract_strided_slice %315 {offsets = [0, 96], sizes = [8, 32], strides = [1, 1]} : vector<8x128xf32> to vector<8x32xf32>
    %321 = arith.mulf %318, %305 : vector<8x32xf32>
    %322 = arith.mulf %317, %319 : vector<8x32xf32>
    %323 = arith.addf %321, %322 : vector<8x32xf32>
    %324 = math.tanh %323 : vector<8x32xf32>
    %325 = arith.mulf %320, %324 : vector<8x32xf32>
    %326 = tpu.concatenate %325, %323 in 1 : vector<8x32xf32>, vector<8x32xf32> -> vector<8x64xf32>
    %c1 = arith.constant 1 : index
    %c0_69 = arith.constant 0 : index
    %c0_70 = arith.constant 0 : index
    %327 = vector.load %arg8[%c1, %c0_69, %c0_70] : memref<2x8x64xf32, #tpu.memory_space<vmem>>, vector<1x8x64xf32>
    %328 = vector.shape_cast %327 : vector<1x8x64xf32> to vector<8x64xf32>
    %329 = vector.shape_cast %326 : vector<8x64xf32> to vector<1x8x64xf32>
    tpu.vector_store %arg8[%c1, %c0_69, %c0_70], %329 {strides = array<i32>} : memref<2x8x64xf32, #tpu.memory_space<vmem>>, vector<1x8x64xf32>,
    return
  }
}

</mosaic_0001>

<llo_original>
// kernel: encoder_forward.1
$region0: #{encoder_forward.1}
  #allocation0 [shape = 'u32[]', space=smem, size = 0x4, offset = 0x4, fixed_abs, tag = 'smem constant byte address 0x4 - core index']
  #allocation1 [shape = 'u32[72,128]{1,0:T(1,128)}', space=vmem, size = 0x9000, scoped, tag = 'internal scratch']
  #allocation2 [shape = 'f32[64,32]{1,0:T(8,128)}', space=vmem, size = 0x8000, scoped, tag = 'scratch operand']
  %s0 = inlined_call_operand.vmem [shape: s32[64,1], index: 0, kind: input, shape index: {}]
  %s1 = inlined_call_operand.vmem [shape: f32[32,16], index: 1, kind: input, shape index: {}]
  %s2 = inlined_call_operand.vmem [shape: f32[16,128], index: 2, kind: input, shape index: {}]
  %s3 = inlined_call_operand.vmem [shape: f32[32,128], index: 3, kind: input, shape index: {}]
  %s4 = inlined_call_operand.vmem [shape: f32[1,128], index: 4, kind: input, shape index: {}]
  %s5 = inlined_call_operand.vmem [shape: f32[32,128], index: 5, kind: input, shape index: {}]
  %s6 = inlined_call_operand.vmem [shape: f32[32,128], index: 6, kind: input, shape index: {}]
  %s7 = inlined_call_operand.vmem [shape: f32[1,128], index: 7, kind: input, shape index: {}]
  %s8 = inlined_call_operand.vmem [shape: f32[2,8,64], index: 8, kind: output, shape index: {}]
  %s9 = sld [smem:[#allocation0]]
  $region42: #{encoder_forward.1} parent=0
    _
  %s11 = ssub.s32 1, %s9
  %s12 = scalar_select 0, %s11, %s9
  // Predicated region
  $region2: #{encoder_forward.1} parent=0 // pred_check
    _
  $region3: #{encoder_forward.1} parent=0 // pred_check_branch
    %14 = sbr.rel (0) target = $region5
  $region4: #{encoder_forward.1} parent=0 // pred_region
    _
  $region5: #{encoder_forward.1} parent=0 // pred_fallthru
    _
  // Predicated region
  $region6: #{encoder_forward.1} parent=0 // pred_check
    _
  $region7: #{encoder_forward.1} parent=0 // pred_check_branch
    %16 = sbr.rel (0) target = $region9
  $region8: #{encoder_forward.1} parent=0 // pred_region
    _
  $region9: #{encoder_forward.1} parent=0 // pred_fallthru
    _
  // Predicated region
  $region10: #{encoder_forward.1} parent=0 // pred_check
    _
  $region11: #{encoder_forward.1} parent=0 // pred_check_branch
    %18 = sbr.rel (0) target = $region13
  $region12: #{encoder_forward.1} parent=0 // pred_region
    _
  $region13: #{encoder_forward.1} parent=0 // pred_fallthru
    _
  // Predicated region
  $region14: #{encoder_forward.1} parent=0 // pred_check
    _
  $region15: #{encoder_forward.1} parent=0 // pred_check_branch
    %20 = sbr.rel (0) target = $region17
  $region16: #{encoder_forward.1} parent=0 // pred_region
    _
  $region17: #{encoder_forward.1} parent=0 // pred_fallthru
    _
  // Predicated region
  $region18: #{encoder_forward.1} parent=0 // pred_check
    _
  $region19: #{encoder_forward.1} parent=0 // pred_check_branch
    %22 = sbr.rel (0) target = $region21
  $region20: #{encoder_forward.1} parent=0 // pred_region
    _
  $region21: #{encoder_forward.1} parent=0 // pred_fallthru
    _
  // Predicated region
  $region22: #{encoder_forward.1} parent=0 // pred_check
    _
  $region23: #{encoder_forward.1} parent=0 // pred_check_branch
    %24 = sbr.rel (0) target = $region25
  $region24: #{encoder_forward.1} parent=0 // pred_region
    _
  $region25: #{encoder_forward.1} parent=0 // pred_fallthru
    _
  // Predicated region
  $region26: #{encoder_forward.1} parent=0 // pred_check
    _
  $region27: #{encoder_forward.1} parent=0 // pred_check_branch
    %26 = sbr.rel (0) target = $region29
  $region28: #{encoder_forward.1} parent=0 // pred_region
    _
  $region29: #{encoder_forward.1} parent=0 // pred_fallthru
    _
  // Predicated region
  $region30: #{encoder_forward.1} parent=0 // pred_check
    _
  $region31: #{encoder_forward.1} parent=0 // pred_check_branch
    %28 = sbr.rel (0) target = $region33
  $region32: #{encoder_forward.1} parent=0 // pred_region
    _
  $region33: #{encoder_forward.1} parent=0 // pred_fallthru
    _
  %v29 = vld [vmem:[%s0] sm:$0xff]
  %v30 = vld [vmem:[%s0 + $0x8] sm:$0xff]
  %v31 = vld [vmem:[%s0 + $0x10] sm:$0xff]
  %v32 = vld [vmem:[%s0 + $0x18] sm:$0xff]
  %v33 = vld [vmem:[%s0 + $0x20] sm:$0xff]
  %v34 = vld [vmem:[%s0 + $0x28] sm:$0xff]
  %v35 = vld [vmem:[%s0 + $0x30] sm:$0xff]
  %v36 = vld [vmem:[%s0 + $0x38] sm:$0xff]
  %v37 = vlaneseq
  %v38 = vand.u32 %v37, 127
  %39 = vset.pattern.permute.xlu0 0
  %40 = vperm.xlu0 %39, %v29
  %v41 = vpop.permute.xlu0 %40
  %42 = vset.pattern.permute.xlu0 0
  %43 = vperm.xlu0 %42, %v30
  %v44 = vpop.permute.xlu0 %43
  %45 = vset.pattern.permute.xlu0 0
  %46 = vperm.xlu0 %45, %v31
  %v47 = vpop.permute.xlu0 %46
  %48 = vset.pattern.permute.xlu0 0
  %49 = vperm.xlu0 %48, %v32
  %v50 = vpop.permute.xlu0 %49
  %51 = vset.pattern.permute.xlu0 0
  %52 = vperm.xlu0 %51, %v33
  %v53 = vpop.permute.xlu0 %52
  %54 = vset.pattern.permute.xlu0 0
  %55 = vperm.xlu0 %54, %v34
  %v56 = vpop.permute.xlu0 %55
  %57 = vset.pattern.permute.xlu0 0
  %58 = vperm.xlu0 %57, %v35
  %v59 = vpop.permute.xlu0 %58
  %60 = vset.pattern.permute.xlu0 0
  %61 = vperm.xlu0 %60, %v36
  %v62 = vpop.permute.xlu0 %61
  %vm63 = vcmp.eq.s32.totalorder %v41, %v38
  %vm64 = vcmp.eq.s32.totalorder %v44, %v38
  %vm65 = vcmp.eq.s32.totalorder %v47, %v38
  %vm66 = vcmp.eq.s32.totalorder %v50, %v38
  %vm67 = vcmp.eq.s32.totalorder %v53, %v38
  %vm68 = vcmp.eq.s32.totalorder %v56, %v38
  %vm69 = vcmp.eq.s32.totalorder %v59, %v38
  %vm70 = vcmp.eq.s32.totalorder %v62, %v38
  %v71 = vsel %vm63, 1.0, 0.0
  %v72 = vsel %vm64, 1.0, 0.0
  %v73 = vsel %vm65, 1.0, 0.0
  %v74 = vsel %vm66, 1.0, 0.0
  %v75 = vsel %vm67, 1.0, 0.0
  %v76 = vsel %vm68, 1.0, 0.0
  %v77 = vsel %vm69, 1.0, 0.0
  %v78 = vsel %vm70, 1.0, 0.0
  %v79 = vld [vmem:[%s1] sm:$0xff]
  %v80 = vld [vmem:[%s1 + $0x8] sm:$0xff]
  %v81 = vld [vmem:[%s1 + $0x10] sm:$0xff]
  %v82 = vld [vmem:[%s1 + $0x18] sm:$0xff]
  %vm83 = vcmask 261120
  %v85 = vsel %vm83, %v71, 0
  %v88 = vsel %vm83, %v72, 0
  %v91 = vsel %vm83, %v73, 0
  %v94 = vsel %vm83, %v74, 0
  %v97 = vsel %vm83, %v75, 0
  %v100 = vsel %vm83, %v76, 0
  %v103 = vsel %vm83, %v77, 0
  %v106 = vsel %vm83, %v78, 0
  %108 = vmatpush.msra.mxu0 0.0
  %109 = vmatpush.msra.mxu0 0.0
  %110 = vmatpush.msra.mxu0 0.0
  %111 = vmatpush.msra.mxu0 0.0
  %112 = vmatpush.msra.mxu0 0.0
  %113 = vmatpush.msra.mxu0 0.0
  %114 = vmatpush.msra.mxu0 0.0
  %115 = vmatpush.msra.mxu0 0.0
  %116 = vmatpush.msra.mxu0 0.0
  %117 = vmatpush.msra.mxu0 0.0
  %118 = vmatpush.msra.mxu0 0.0
  %119 = vmatpush.msra.mxu0 0.0
  %120 = vmatpush.msra.mxu0 %v82
  %121 = vmatpush.msra.mxu0 %v81
  %122 = vmatpush.msra.mxu0 %v80
  %123 = vmatpush.msra.mxu0 %v79
  %124 = vmatmul.f32.gmra.mxu0 %v85
  %v125 = vpop.f32.mrf.mxu0
  %v126 = vadd.f32 0.0, %v125
  %127 = vmatmul.f32.gmra.mxu0 %v88
  %v128 = vpop.f32.mrf.mxu0
  %v129 = vadd.f32 0.0, %v128
  %130 = vmatmul.f32.gmra.mxu0 %v91
  %v131 = vpop.f32.mrf.mxu0
  %v132 = vadd.f32 0.0, %v131
  %133 = vmatmul.f32.gmra.mxu0 %v94
  %v134 = vpop.f32.mrf.mxu0
  %v135 = vadd.f32 0.0, %v134
  %136 = vmatmul.f32.gmra.mxu0 %v97
  %v137 = vpop.f32.mrf.mxu0
  %v138 = vadd.f32 0.0, %v137
  %139 = vmatmul.f32.gmra.mxu0 %v100
  %v140 = vpop.f32.mrf.mxu0
  %v141 = vadd.f32 0.0, %v140
  %142 = vmatmul.f32.gmra.mxu0 %v103
  %v143 = vpop.f32.mrf.mxu0
  %v144 = vadd.f32 0.0, %v143
  %145 = vmatmul.f32.gmra.mxu0 %v106
  %v146 = vpop.f32.mrf.mxu0
  %v147 = vadd.f32 0.0, %v146
  %148 = vdwg.mxu0
  %v149 = vld [vmem:[%s2] sm:$0xff]
  %v150 = vld [vmem:[%s2 + $0x8] sm:$0xff]
  %v151 = vld [vmem:[%s3] sm:$0xff]
  %v152 = vld [vmem:[%s3 + $0x8] sm:$0xff]
  %v153 = vld [vmem:[%s3 + $0x10] sm:$0xff]
  %v154 = vld [vmem:[%s3 + $0x18] sm:$0xff]
  %v155 = vld [vmem:[%s4] sm:$0x1]
  %v157 = vperm.slane %v155, 0
  %vm159 = vcmask 130048
  %v161 = vsel %vm159, %v126, 0
  %v164 = vsel %vm159, %v129, 0
  %v167 = vsel %vm159, %v132, 0
  %v170 = vsel %vm159, %v135, 0
  %v173 = vsel %vm159, %v138, 0
  %v176 = vsel %vm159, %v141, 0
  %v179 = vsel %vm159, %v144, 0
  %v182 = vsel %vm159, %v147, 0
  %184 = vmatpush.msra.mxu0 0.0
  %185 = vmatpush.msra.mxu0 0.0
  %186 = vmatpush.msra.mxu0 0.0
  %187 = vmatpush.msra.mxu0 0.0
  %188 = vmatpush.msra.mxu0 0.0
  %189 = vmatpush.msra.mxu0 0.0
  %190 = vmatpush.msra.mxu0 0.0
  %191 = vmatpush.msra.mxu0 0.0
  %192 = vmatpush.msra.mxu0 0.0
  %193 = vmatpush.msra.mxu0 0.0
  %194 = vmatpush.msra.mxu0 0.0
  %195 = vmatpush.msra.mxu0 0.0
  %196 = vmatpush.msra.mxu0 0.0
  %197 = vmatpush.msra.mxu0 0.0
  %198 = vmatpush.msra.mxu0 %v150
  %199 = vmatpush.msra.mxu0 %v149
  %200 = vmatmul.f32.gmra.mxu0 %v161
  %v201 = vpop.f32.mrf.mxu0
  %v202 = vadd.f32 %v157, %v201
  %203 = vmatmul.f32.gmra.mxu0 %v164
  %v204 = vpop.f32.mrf.mxu0
  %v205 = vadd.f32 %v157, %v204
  %206 = vmatmul.f32.gmra.mxu0 %v167
  %v207 = vpop.f32.mrf.mxu0
  %v208 = vadd.f32 %v157, %v207
  %209 = vmatmul.f32.gmra.mxu0 %v170
  %v210 = vpop.f32.mrf.mxu0
  %v211 = vadd.f32 %v157, %v210
  %212 = vmatmul.f32.gmra.mxu0 %v173
  %v213 = vpop.f32.mrf.mxu0
  %v214 = vadd.f32 %v157, %v213
  %215 = vmatmul.f32.gmra.mxu0 %v176
  %v216 = vpop.f32.mrf.mxu0
  %v217 = vadd.f32 %v157, %v216
  %218 = vmatmul.f32.gmra.mxu0 %v179
  %v219 = vpop.f32.mrf.mxu0
  %v220 = vadd.f32 %v157, %v219
  %221 = vmatmul.f32.gmra.mxu0 %v182
  %v222 = vpop.f32.mrf.mxu0
  %v223 = vadd.f32 %v157, %v222
  %224 = vdwg.mxu0
  %v226 = vsel %vm83, 0.0, 0
  %228 = vmatpush.msra.mxu0 0.0
  %229 = vmatpush.msra.mxu0 0.0
  %230 = vmatpush.msra.mxu0 0.0
  %231 = vmatpush.msra.mxu0 0.0
  %232 = vmatpush.msra.mxu0 0.0
  %233 = vmatpush.msra.mxu0 0.0
  %234 = vmatpush.msra.mxu0 0.0
  %235 = vmatpush.msra.mxu0 0.0
  %236 = vmatpush.msra.mxu0 0.0
  %237 = vmatpush.msra.mxu0 0.0
  %238 = vmatpush.msra.mxu0 0.0
  %239 = vmatpush.msra.mxu0 0.0
  %240 = vmatpush.msra.mxu0 %v154
  %241 = vmatpush.msra.mxu0 %v153
  %242 = vmatpush.msra.mxu0 %v152
  %243 = vmatpush.msra.mxu0 %v151
  %244 = vmatmul.f32.gmra.mxu0 %v226
  %v245 = vpop.f32.mrf.mxu0
  %v246 = vadd.f32 0.0, %v245
  %247 = vdwg.mxu0
  %v248 = vadd.f32 %v202, %v246
  %v249 = vxor.u32 %v248, 2147483648
  %v250 = vmul.f32 %v249, 1.442695
  %v251 = vpow.pop %v250
  %v252 = vadd.f32 %v251, 1.0
  %v253 = vrcp.pop %v252
  %v254 = vmul.f32 %v252, %v253
  %v255 = vsub.f32 1.0, %v254
  %v256 = vmul.f32 %v253, %v255
  %v257 = vadd.f32 %v253, %v256
  %vm258 = vweird.f32 %v252
  %vm259 = vweird.f32 %v253
  %vm260 = vmor %vm258, %vm259
  %v261 = vsel %vm260, %v253, %v257
  %v262 = vand.u32 2147483647, %v252
  %vm263 = vcmp.eq.f32.partialorder %v262, 8.507059e+37
  %v264 = vand.u32 %v252, 2147483648
  %v265 = vor.u32 1.1754944e-38, %v264
  %v266 = vsel %vm263, %v265, %v261
  %v267 = vmul.f32 1.0, %v266
  %v268 = vtanh.pop %v248
  %v269 = vmul.f32 %v267, 0.0
  %271 = vrot.lane.b32.xlu0 %v268, 64
  %v272 = vpop.permute.xlu0 %271
  %v274 = vmul.f32 %v267, %v272
  %276 = vrot.lane.b32.xlu0 %v274, 32
  %v277 = vpop.permute.xlu0 %276
  %v279 = vadd.f32 %v269, %v277
  %v280 = vtanh.pop %v279
  %282 = vrot.lane.b32.xlu0 %v280, 64
  %v283 = vpop.permute.xlu0 %282
  %v285 = vmul.f32 %v267, %v283
  %287 = vrot.lane.b32.xlu0 %v285, 32
  %v288 = vpop.permute.xlu0 %287
  %290 = vst.msk [vmem:[#allocation2] sm:$0xff] %vm83, %v288
  %v291 = vsel %vm83, %v288, 0
  %293 = vmatpush.msra.mxu0 0.0
  %294 = vmatpush.msra.mxu0 0.0
  %295 = vmatpush.msra.mxu0 0.0
  %296 = vmatpush.msra.mxu0 0.0
  %297 = vmatpush.msra.mxu0 0.0
  %298 = vmatpush.msra.mxu0 0.0
  %299 = vmatpush.msra.mxu0 0.0
  %300 = vmatpush.msra.mxu0 0.0
  %301 = vmatpush.msra.mxu0 0.0
  %302 = vmatpush.msra.mxu0 0.0
  %303 = vmatpush.msra.mxu0 0.0
  %304 = vmatpush.msra.mxu0 0.0
  %305 = vmatpush.msra.mxu0 %v154
  %306 = vmatpush.msra.mxu0 %v153
  %307 = vmatpush.msra.mxu0 %v152
  %308 = vmatpush.msra.mxu0 %v151
  %309 = vmatmul.f32.gmra.mxu0 %v291
  %v310 = vpop.f32.mrf.mxu0
  %v311 = vadd.f32 0.0, %v310
  %312 = vdwg.mxu0
  %v313 = vadd.f32 %v205, %v311
  %v314 = vxor.u32 %v313, 2147483648
  %v315 = vmul.f32 %v314, 1.442695
  %v316 = vpow.pop %v315
  %v317 = vadd.f32 %v316, 1.0
  %v318 = vrcp.pop %v317
  %v319 = vmul.f32 %v317, %v318
  %v320 = vsub.f32 1.0, %v319
  %v321 = vmul.f32 %v318, %v320
  %v322 = vadd.f32 %v318, %v321
  %vm323 = vweird.f32 %v317
  %vm324 = vweird.f32 %v318
  %vm325 = vmor %vm323, %vm324
  %v326 = vsel %vm325, %v318, %v322
  %v327 = vand.u32 2147483647, %v317
  %vm328 = vcmp.eq.f32.partialorder %v327, 8.507059e+37
  %v329 = vand.u32 %v317, 2147483648
  %v330 = vor.u32 1.1754944e-38, %v329
  %v331 = vsel %vm328, %v330, %v326
  %v332 = vmul.f32 1.0, %v331
  %v333 = vtanh.pop %v313
  %v334 = vmul.f32 %v332, %v279
  %336 = vrot.lane.b32.xlu0 %v333, 64
  %v337 = vpop.permute.xlu0 %336
  %v339 = vmul.f32 %v332, %v337
  %341 = vrot.lane.b32.xlu0 %v339, 32
  %v342 = vpop.permute.xlu0 %341
  %v344 = vadd.f32 %v334, %v342
  %v345 = vtanh.pop %v344
  %347 = vrot.lane.b32.xlu0 %v345, 64
  %v348 = vpop.permute.xlu0 %347
  %v350 = vmul.f32 %v332, %v348
  %352 = vrot.lane.b32.xlu0 %v350, 32
  %v353 = vpop.permute.xlu0 %352
  %355 = vst.msk [vmem:[#allocation2 + $0x8] sm:$0xff] %vm83, %v353
  %v356 = vsel %vm83, %v353, 0
  %358 = vmatpush.msra.mxu0 0.0
  %359 = vmatpush.msra.mxu0 0.0
  %360 = vmatpush.msra.mxu0 0.0
  %361 = vmatpush.msra.mxu0 0.0
  %362 = vmatpush.msra.mxu0 0.0
  %363 = vmatpush.msra.mxu0 0.0
  %364 = vmatpush.msra.mxu0 0.0
  %365 = vmatpush.msra.mxu0 0.0
  %366 = vmatpush.msra.mxu0 0.0
  %367 = vmatpush.msra.mxu0 0.0
  %368 = vmatpush.msra.mxu0 0.0
  %369 = vmatpush.msra.mxu0 0.0
  %370 = vmatpush.msra.mxu0 %v154
  %371 = vmatpush.msra.mxu0 %v153
  %372 = vmatpush.msra.mxu0 %v152
  %373 = vmatpush.msra.mxu0 %v151
  %374 = vmatmul.f32.gmra.mxu0 %v356
  %v375 = vpop.f32.mrf.mxu0
  %v376 = vadd.f32 0.0, %v375
  %377 = vdwg.mxu0
  %v378 = vadd.f32 %v208, %v376
  %v379 = vxor.u32 %v378, 2147483648
  %v380 = vmul.f32 %v379, 1.442695
  %v381 = vpow.pop %v380
  %v382 = vadd.f32 %v381, 1.0
  %v383 = vrcp.pop %v382
  %v384 = vmul.f32 %v382, %v383
  %v385 = vsub.f32 1.0, %v384
  %v386 = vmul.f32 %v383, %v385
  %v387 = vadd.f32 %v383, %v386
  %vm388 = vweird.f32 %v382
  %vm389 = vweird.f32 %v383
  %vm390 = vmor %vm388, %vm389
  %v391 = vsel %vm390, %v383, %v387
  %v392 = vand.u32 2147483647, %v382
  %vm393 = vcmp.eq.f32.partialorder %v392, 8.507059e+37
  %v394 = vand.u32 %v382, 2147483648
  %v395 = vor.u32 1.1754944e-38, %v394
  %v396 = vsel %vm393, %v395, %v391
  %v397 = vmul.f32 1.0, %v396
  %v398 = vtanh.pop %v378
  %v399 = vmul.f32 %v397, %v344
  %401 = vrot.lane.b32.xlu0 %v398, 64
  %v402 = vpop.permute.xlu0 %401
  %v404 = vmul.f32 %v397, %v402
  %406 = vrot.lane.b32.xlu0 %v404, 32
  %v407 = vpop.permute.xlu0 %406
  %v409 = vadd.f32 %v399, %v407
  %v410 = vtanh.pop %v409
  %412 = vrot.lane.b32.xlu0 %v410, 64
  %v413 = vpop.permute.xlu0 %412
  %v415 = vmul.f32 %v397, %v413
  %417 = vrot.lane.b32.xlu0 %v415, 32
  %v418 = vpop.permute.xlu0 %417
  %420 = vst.msk [vmem:[#allocation2 + $0x10] sm:$0xff] %vm83, %v418
  %v421 = vsel %vm83, %v418, 0
  %423 = vmatpush.msra.mxu0 0.0
  %424 = vmatpush.msra.mxu0 0.0
  %425 = vmatpush.msra.mxu0 0.0
  %426 = vmatpush.msra.mxu0 0.0
  %427 = vmatpush.msra.mxu0 0.0
  %428 = vmatpush.msra.mxu0 0.0
  %429 = vmatpush.msra.mxu0 0.0
  %430 = vmatpush.msra.mxu0 0.0
  %431 = vmatpush.msra.mxu0 0.0
  %432 = vmatpush.msra.mxu0 0.0
  %433 = vmatpush.msra.mxu0 0.0
  %434 = vmatpush.msra.mxu0 0.0
  %435 = vmatpush.msra.mxu0 %v154
  %436 = vmatpush.msra.mxu0 %v153
  %437 = vmatpush.msra.mxu0 %v152
  %438 = vmatpush.msra.mxu0 %v151
  %439 = vmatmul.f32.gmra.mxu0 %v421
  %v440 = vpop.f32.mrf.mxu0
  %v441 = vadd.f32 0.0, %v440
  %442 = vdwg.mxu0
  %v443 = vadd.f32 %v211, %v441
  %v444 = vxor.u32 %v443, 2147483648
  %v445 = vmul.f32 %v444, 1.442695
  %v446 = vpow.pop %v445
  %v447 = vadd.f32 %v446, 1.0
  %v448 = vrcp.pop %v447
  %v449 = vmul.f32 %v447, %v448
  %v450 = vsub.f32 1.0, %v449
  %v451 = vmul.f32 %v448, %v450
  %v452 = vadd.f32 %v448, %v451
  %vm453 = vweird.f32 %v447
  %vm454 = vweird.f32 %v448
  %vm455 = vmor %vm453, %vm454
  %v456 = vsel %vm455, %v448, %v452
  %v457 = vand.u32 2147483647, %v447
  %vm458 = vcmp.eq.f32.partialorder %v457, 8.507059e+37
  %v459 = vand.u32 %v447, 2147483648
  %v460 = vor.u32 1.1754944e-38, %v459
  %v461 = vsel %vm458, %v460, %v456
  %v462 = vmul.f32 1.0, %v461
  %v463 = vtanh.pop %v443
  %v464 = vmul.f32 %v462, %v409
  %466 = vrot.lane.b32.xlu0 %v463, 64
  %v467 = vpop.permute.xlu0 %466
  %v469 = vmul.f32 %v462, %v467
  %471 = vrot.lane.b32.xlu0 %v469, 32
  %v472 = vpop.permute.xlu0 %471
  %v474 = vadd.f32 %v464, %v472
  %v475 = vtanh.pop %v474
  %477 = vrot.lane.b32.xlu0 %v475, 64
  %v478 = vpop.permute.xlu0 %477
  %v480 = vmul.f32 %v462, %v478
  %482 = vrot.lane.b32.xlu0 %v480, 32
  %v483 = vpop.permute.xlu0 %482
  %485 = vst.msk [vmem:[#allocation2 + $0x18] sm:$0xff] %vm83, %v483
  %v486 = vsel %vm83, %v483, 0
  %488 = vmatpush.msra.mxu0 0.0
  %489 = vmatpush.msra.mxu0 0.0
  %490 = vmatpush.msra.mxu0 0.0
  %491 = vmatpush.msra.mxu0 0.0
  %492 = vmatpush.msra.mxu0 0.0
  %493 = vmatpush.msra.mxu0 0.0
  %494 = vmatpush.msra.mxu0 0.0
  %495 = vmatpush.msra.mxu0 0.0
  %496 = vmatpush.msra.mxu0 0.0
  %497 = vmatpush.msra.mxu0 0.0
  %498 = vmatpush.msra.mxu0 0.0
  %499 = vmatpush.msra.mxu0 0.0
  %500 = vmatpush.msra.mxu0 %v154
  %501 = vmatpush.msra.mxu0 %v153
  %502 = vmatpush.msra.mxu0 %v152
  %503 = vmatpush.msra.mxu0 %v151
  %504 = vmatmul.f32.gmra.mxu0 %v486
  %v505 = vpop.f32.mrf.mxu0
  %v506 = vadd.f32 0.0, %v505
  %507 = vdwg.mxu0
  %v508 = vadd.f32 %v214, %v506
  %v509 = vxor.u32 %v508, 2147483648
  %v510 = vmul.f32 %v509, 1.442695
  %v511 = vpow.pop %v510
  %v512 = vadd.f32 %v511, 1.0
  %v513 = vrcp.pop %v512
  %v514 = vmul.f32 %v512, %v513
  %v515 = vsub.f32 1.0, %v514
  %v516 = vmul.f32 %v513, %v515
  %v517 = vadd.f32 %v513, %v516
  %vm518 = vweird.f32 %v512
  %vm519 = vweird.f32 %v513
  %vm520 = vmor %vm518, %vm519
  %v521 = vsel %vm520, %v513, %v517
  %v522 = vand.u32 2147483647, %v512
  %vm523 = vcmp.eq.f32.partialorder %v522, 8.507059e+37
  %v524 = vand.u32 %v512, 2147483648
  %v525 = vor.u32 1.1754944e-38, %v524
  %v526 = vsel %vm523, %v525, %v521
  %v527 = vmul.f32 1.0, %v526
  %v528 = vtanh.pop %v508
  %v529 = vmul.f32 %v527, %v474
  %531 = vrot.lane.b32.xlu0 %v528, 64
  %v532 = vpop.permute.xlu0 %531
  %v534 = vmul.f32 %v527, %v532
  %536 = vrot.lane.b32.xlu0 %v534, 32
  %v537 = vpop.permute.xlu0 %536
  %v539 = vadd.f32 %v529, %v537
  %v540 = vtanh.pop %v539
  %542 = vrot.lane.b32.xlu0 %v540, 64
  %v543 = vpop.permute.xlu0 %542
  %v545 = vmul.f32 %v527, %v543
  %547 = vrot.lane.b32.xlu0 %v545, 32
  %v548 = vpop.permute.xlu0 %547
  %550 = vst.msk [vmem:[#allocation2 + $0x20] sm:$0xff] %vm83, %v548
  %v551 = vsel %vm83, %v548, 0
  %553 = vmatpush.msra.mxu0 0.0
  %554 = vmatpush.msra.mxu0 0.0
  %555 = vmatpush.msra.mxu0 0.0
  %556 = vmatpush.msra.mxu0 0.0
  %557 = vmatpush.msra.mxu0 0.0
  %558 = vmatpush.msra.mxu0 0.0
  %559 = vmatpush.msra.mxu0 0.0
  %560 = vmatpush.msra.mxu0 0.0
  %561 = vmatpush.msra.mxu0 0.0
  %562 = vmatpush.msra.mxu0 0.0
  %563 = vmatpush.msra.mxu0 0.0
  %564 = vmatpush.msra.mxu0 0.0
  %565 = vmatpush.msra.mxu0 %v154
  %566 = vmatpush.msra.mxu0 %v153
  %567 = vmatpush.msra.mxu0 %v152
  %568 = vmatpush.msra.mxu0 %v151
  %569 = vmatmul.f32.gmra.mxu0 %v551
  %v570 = vpop.f32.mrf.mxu0
  %v571 = vadd.f32 0.0, %v570
  %572 = vdwg.mxu0
  %v573 = vadd.f32 %v217, %v571
  %v574 = vxor.u32 %v573, 2147483648
  %v575 = vmul.f32 %v574, 1.442695
  %v576 = vpow.pop %v575
  %v577 = vadd.f32 %v576, 1.0
  %v578 = vrcp.pop %v577
  %v579 = vmul.f32 %v577, %v578
  %v580 = vsub.f32 1.0, %v579
  %v581 = vmul.f32 %v578, %v580
  %v582 = vadd.f32 %v578, %v581
  %vm583 = vweird.f32 %v577
  %vm584 = vweird.f32 %v578
  %vm585 = vmor %vm583, %vm584
  %v586 = vsel %vm585, %v578, %v582
  %v587 = vand.u32 2147483647, %v577
  %vm588 = vcmp.eq.f32.partialorder %v587, 8.507059e+37
  %v589 = vand.u32 %v577, 2147483648
  %v590 = vor.u32 1.1754944e-38, %v589
  %v591 = vsel %vm588, %v590, %v586
  %v592 = vmul.f32 1.0, %v591
  %v593 = vtanh.pop %v573
  %v594 = vmul.f32 %v592, %v539
  %596 = vrot.lane.b32.xlu0 %v593, 64
  %v597 = vpop.permute.xlu0 %596
  %v599 = vmul.f32 %v592, %v597
  %601 = vrot.lane.b32.xlu0 %v599, 32
  %v602 = vpop.permute.xlu0 %601
  %v604 = vadd.f32 %v594, %v602
  %v605 = vtanh.pop %v604
  %607 = vrot.lane.b32.xlu0 %v605, 64
  %v608 = vpop.permute.xlu0 %607
  %v610 = vmul.f32 %v592, %v608
  %612 = vrot.lane.b32.xlu0 %v610, 32
  %v613 = vpop.permute.xlu0 %612
  %615 = vst.msk [vmem:[#allocation2 + $0x28] sm:$0xff] %vm83, %v613
  %v616 = vsel %vm83, %v613, 0
  %618 = vmatpush.msra.mxu0 0.0
  %619 = vmatpush.msra.mxu0 0.0
  %620 = vmatpush.msra.mxu0 0.0
  %621 = vmatpush.msra.mxu0 0.0
  %622 = vmatpush.msra.mxu0 0.0
  %623 = vmatpush.msra.mxu0 0.0
  %624 = vmatpush.msra.mxu0 0.0
  %625 = vmatpush.msra.mxu0 0.0
  %626 = vmatpush.msra.mxu0 0.0
  %627 = vmatpush.msra.mxu0 0.0
  %628 = vmatpush.msra.mxu0 0.0
  %629 = vmatpush.msra.mxu0 0.0
  %630 = vmatpush.msra.mxu0 %v154
  %631 = vmatpush.msra.mxu0 %v153
  %632 = vmatpush.msra.mxu0 %v152
  %633 = vmatpush.msra.mxu0 %v151
  %634 = vmatmul.f32.gmra.mxu0 %v616
  %v635 = vpop.f32.mrf.mxu0
  %v636 = vadd.f32 0.0, %v635
  %637 = vdwg.mxu0
  %v638 = vadd.f32 %v220, %v636
  %v639 = vxor.u32 %v638, 2147483648
  %v640 = vmul.f32 %v639, 1.442695
  %v641 = vpow.pop %v640
  %v642 = vadd.f32 %v641, 1.0
  %v643 = vrcp.pop %v642
  %v644 = vmul.f32 %v642, %v643
  %v645 = vsub.f32 1.0, %v644
  %v646 = vmul.f32 %v643, %v645
  %v647 = vadd.f32 %v643, %v646
  %vm648 = vweird.f32 %v642
  %vm649 = vweird.f32 %v643
  %vm650 = vmor %vm648, %vm649
  %v651 = vsel %vm650, %v643, %v647
  %v652 = vand.u32 2147483647, %v642
  %vm653 = vcmp.eq.f32.partialorder %v652, 8.507059e+37
  %v654 = vand.u32 %v642, 2147483648
  %v655 = vor.u32 1.1754944e-38, %v654
  %v656 = vsel %vm653, %v655, %v651
  %v657 = vmul.f32 1.0, %v656
  %v658 = vtanh.pop %v638
  %v659 = vmul.f32 %v657, %v604
  %661 = vrot.lane.b32.xlu0 %v658, 64
  %v662 = vpop.permute.xlu0 %661
  %v664 = vmul.f32 %v657, %v662
  %666 = vrot.lane.b32.xlu0 %v664, 32
  %v667 = vpop.permute.xlu0 %666
  %v669 = vadd.f32 %v659, %v667
  %v670 = vtanh.pop %v669
  %672 = vrot.lane.b32.xlu0 %v670, 64
  %v673 = vpop.permute.xlu0 %672
  %v675 = vmul.f32 %v657, %v673
  %677 = vrot.lane.b32.xlu0 %v675, 32
  %v678 = vpop.permute.xlu0 %677
  %680 = vst.msk [vmem:[#allocation2 + $0x30] sm:$0xff] %vm83, %v678
  %v681 = vsel %vm83, %v678, 0
  %683 = vmatpush.msra.mxu0 0.0
  %684 = vmatpush.msra.mxu0 0.0
  %685 = vmatpush.msra.mxu0 0.0
  %686 = vmatpush.msra.mxu0 0.0
  %687 = vmatpush.msra.mxu0 0.0
  %688 = vmatpush.msra.mxu0 0.0
  %689 = vmatpush.msra.mxu0 0.0
  %690 = vmatpush.msra.mxu0 0.0
  %691 = vmatpush.msra.mxu0 0.0
  %692 = vmatpush.msra.mxu0 0.0
  %693 = vmatpush.msra.mxu0 0.0
  %694 = vmatpush.msra.mxu0 0.0
  %695 = vmatpush.msra.mxu0 %v154
  %696 = vmatpush.msra.mxu0 %v153
  %697 = vmatpush.msra.mxu0 %v152
  %698 = vmatpush.msra.mxu0 %v151
  %699 = vmatmul.f32.gmra.mxu0 %v681
  %v700 = vpop.f32.mrf.mxu0
  %v701 = vadd.f32 0.0, %v700
  %702 = vdwg.mxu0
  %v703 = vadd.f32 %v223, %v701
  %v704 = vxor.u32 %v703, 2147483648
  %v705 = vmul.f32 %v704, 1.442695
  %v706 = vpow.pop %v705
  %v707 = vadd.f32 %v706, 1.0
  %v708 = vrcp.pop %v707
  %v709 = vmul.f32 %v707, %v708
  %v710 = vsub.f32 1.0, %v709
  %v711 = vmul.f32 %v708, %v710
  %v712 = vadd.f32 %v708, %v711
  %vm713 = vweird.f32 %v707
  %vm714 = vweird.f32 %v708
  %vm715 = vmor %vm713, %vm714
  %v716 = vsel %vm715, %v708, %v712
  %v717 = vand.u32 2147483647, %v707
  %vm718 = vcmp.eq.f32.partialorder %v717, 8.507059e+37
  %v719 = vand.u32 %v707, 2147483648
  %v720 = vor.u32 1.1754944e-38, %v719
  %v721 = vsel %vm718, %v720, %v716
  %v722 = vmul.f32 1.0, %v721
  %v723 = vtanh.pop %v703
  %v724 = vmul.f32 %v722, %v669
  %726 = vrot.lane.b32.xlu0 %v723, 64
  %v727 = vpop.permute.xlu0 %726
  %v729 = vmul.f32 %v722, %v727
  %731 = vrot.lane.b32.xlu0 %v729, 32
  %v732 = vpop.permute.xlu0 %731
  %v734 = vadd.f32 %v724, %v732
  %v735 = vtanh.pop %v734
  %737 = vrot.lane.b32.xlu0 %v735, 64
  %v738 = vpop.permute.xlu0 %737
  %v740 = vmul.f32 %v722, %v738
  %742 = vrot.lane.b32.xlu0 %v740, 32
  %v743 = vpop.permute.xlu0 %742
  %745 = vst.msk [vmem:[#allocation2 + $0x38] sm:$0xff] %vm83, %v743
  %v746 = vsel %vm83, %v743, %v734
  %vm747 = vcmask 523264
  %748 = vst.msk [vmem:[%s8] sm:$0xff] %vm747, %v746
  %v749 = vld [vmem:[%s5] sm:$0xff]
  %v750 = vld [vmem:[%s5 + $0x8] sm:$0xff]
  %v751 = vld [vmem:[%s5 + $0x10] sm:$0xff]
  %v752 = vld [vmem:[%s5 + $0x18] sm:$0xff]
  %v753 = vld [vmem:[%s6] sm:$0xff]
  %v754 = vld [vmem:[%s6 + $0x8] sm:$0xff]
  %v755 = vld [vmem:[%s6 + $0x10] sm:$0xff]
  %v756 = vld [vmem:[%s6 + $0x18] sm:$0xff]
  %v757 = vld [vmem:[%s7] sm:$0x1]
  %v758 = vld [vmem:[#allocation2] sm:$0xff]
  %v759 = vld [vmem:[#allocation2 + $0x8] sm:$0xff]
  %v760 = vld [vmem:[#allocation2 + $0x10] sm:$0xff]
  %v761 = vld [vmem:[#allocation2 + $0x18] sm:$0xff]
  %v762 = vld [vmem:[#allocation2 + $0x20] sm:$0xff]
  %v763 = vld [vmem:[#allocation2 + $0x28] sm:$0xff]
  %v764 = vld [vmem:[#allocation2 + $0x30] sm:$0xff]
  %v765 = vld [vmem:[#allocation2 + $0x38] sm:$0xff]
  %v767 = vperm.slane %v757, 0
  %v770 = vsel %vm83, %v758, 0
  %v773 = vsel %vm83, %v759, 0
  %v776 = vsel %vm83, %v760, 0
  %v779 = vsel %vm83, %v761, 0
  %v782 = vsel %vm83, %v762, 0
  %v785 = vsel %vm83, %v763, 0
  %v788 = vsel %vm83, %v764, 0
  %v791 = vsel %vm83, %v765, 0
  %793 = vmatpush.msra.mxu0 0.0
  %794 = vmatpush.msra.mxu0 0.0
  %795 = vmatpush.msra.mxu0 0.0
  %796 = vmatpush.msra.mxu0 0.0
  %797 = vmatpush.msra.mxu0 0.0
  %798 = vmatpush.msra.mxu0 0.0
  %799 = vmatpush.msra.mxu0 0.0
  %800 = vmatpush.msra.mxu0 0.0
  %801 = vmatpush.msra.mxu0 0.0
  %802 = vmatpush.msra.mxu0 0.0
  %803 = vmatpush.msra.mxu0 0.0
  %804 = vmatpush.msra.mxu0 0.0
  %805 = vmatpush.msra.mxu0 %v752
  %806 = vmatpush.msra.mxu0 %v751
  %807 = vmatpush.msra.mxu0 %v750
  %808 = vmatpush.msra.mxu0 %v749
  %809 = vmatmul.f32.gmra.mxu0 %v770
  %v810 = vpop.f32.mrf.mxu0
  %v811 = vadd.f32 %v767, %v810
  %812 = vmatmul.f32.gmra.mxu0 %v773
  %v813 = vpop.f32.mrf.mxu0
  %v814 = vadd.f32 %v767, %v813
  %815 = vmatmul.f32.gmra.mxu0 %v776
  %v816 = vpop.f32.mrf.mxu0
  %v817 = vadd.f32 %v767, %v816
  %818 = vmatmul.f32.gmra.mxu0 %v779
  %v819 = vpop.f32.mrf.mxu0
  %v820 = vadd.f32 %v767, %v819
  %821 = vmatmul.f32.gmra.mxu0 %v782
  %v822 = vpop.f32.mrf.mxu0
  %v823 = vadd.f32 %v767, %v822
  %824 = vmatmul.f32.gmra.mxu0 %v785
  %v825 = vpop.f32.mrf.mxu0
  %v826 = vadd.f32 %v767, %v825
  %827 = vmatmul.f32.gmra.mxu0 %v788
  %v828 = vpop.f32.mrf.mxu0
  %v829 = vadd.f32 %v767, %v828
  %830 = vmatmul.f32.gmra.mxu0 %v791
  %v831 = vpop.f32.mrf.mxu0
  %v832 = vadd.f32 %v767, %v831
  %833 = vdwg.mxu0
  %834 = vmatpush.msra.mxu0 0.0
  %835 = vmatpush.msra.mxu0 0.0
  %836 = vmatpush.msra.mxu0 0.0
  %837 = vmatpush.msra.mxu0 0.0
  %838 = vmatpush.msra.mxu0 0.0
  %839 = vmatpush.msra.mxu0 0.0
  %840 = vmatpush.msra.mxu0 0.0
  %841 = vmatpush.msra.mxu0 0.0
  %842 = vmatpush.msra.mxu0 0.0
  %843 = vmatpush.msra.mxu0 0.0
  %844 = vmatpush.msra.mxu0 0.0
  %845 = vmatpush.msra.mxu0 0.0
  %846 = vmatpush.msra.mxu0 %v756
  %847 = vmatpush.msra.mxu0 %v755
  %848 = vmatpush.msra.mxu0 %v754
  %849 = vmatpush.msra.mxu0 %v753
  %850 = vmatmul.f32.gmra.mxu0 %v226
  %v851 = vpop.f32.mrf.mxu0
  %v852 = vadd.f32 0.0, %v851
  %853 = vdwg.mxu0
  %v854 = vadd.f32 %v811, %v852
  %v855 = vxor.u32 %v854, 2147483648
  %v856 = vmul.f32 %v855, 1.442695
  %v857 = vpow.pop %v856
  %v858 = vadd.f32 %v857, 1.0
  %v859 = vrcp.pop %v858
  %v860 = vmul.f32 %v858, %v859
  %v861 = vsub.f32 1.0, %v860
  %v862 = vmul.f32 %v859, %v861
  %v863 = vadd.f32 %v859, %v862
  %vm864 = vweird.f32 %v858
  %vm865 = vweird.f32 %v859
  %vm866 = vmor %vm864, %vm865
  %v867 = vsel %vm866, %v859, %v863
  %v868 = vand.u32 2147483647, %v858
  %vm869 = vcmp.eq.f32.partialorder %v868, 8.507059e+37
  %v870 = vand.u32 %v858, 2147483648
  %v871 = vor.u32 1.1754944e-38, %v870
  %v872 = vsel %vm869, %v871, %v867
  %v873 = vmul.f32 1.0, %v872
  %v874 = vtanh.pop %v854
  %v875 = vmul.f32 %v873, 0.0
  %877 = vrot.lane.b32.xlu0 %v874, 64
  %v878 = vpop.permute.xlu0 %877
  %v880 = vmul.f32 %v873, %v878
  %882 = vrot.lane.b32.xlu0 %v880, 32
  %v883 = vpop.permute.xlu0 %882
  %v885 = vadd.f32 %v875, %v883
  %v886 = vtanh.pop %v885
  %888 = vrot.lane.b32.xlu0 %v886, 64
  %v889 = vpop.permute.xlu0 %888
  %v891 = vmul.f32 %v873, %v889
  %893 = vrot.lane.b32.xlu0 %v891, 32
  %v894 = vpop.permute.xlu0 %893
  %v895 = vsel %vm83, %v894, 0
  %897 = vmatpush.msra.mxu0 0.0
  %898 = vmatpush.msra.mxu0 0.0
  %899 = vmatpush.msra.mxu0 0.0
  %900 = vmatpush.msra.mxu0 0.0
  %901 = vmatpush.msra.mxu0 0.0
  %902 = vmatpush.msra.mxu0 0.0
  %903 = vmatpush.msra.mxu0 0.0
  %904 = vmatpush.msra.mxu0 0.0
  %905 = vmatpush.msra.mxu0 0.0
  %906 = vmatpush.msra.mxu0 0.0
  %907 = vmatpush.msra.mxu0 0.0
  %908 = vmatpush.msra.mxu0 0.0
  %909 = vmatpush.msra.mxu0 %v756
  %910 = vmatpush.msra.mxu0 %v755
  %911 = vmatpush.msra.mxu0 %v754
  %912 = vmatpush.msra.mxu0 %v753
  %913 = vmatmul.f32.gmra.mxu0 %v895
  %v914 = vpop.f32.mrf.mxu0
  %v915 = vadd.f32 0.0, %v914
  %916 = vdwg.mxu0
  %v917 = vadd.f32 %v814, %v915
  %v918 = vxor.u32 %v917, 2147483648
  %v919 = vmul.f32 %v918, 1.442695
  %v920 = vpow.pop %v919
  %v921 = vadd.f32 %v920, 1.0
  %v922 = vrcp.pop %v921
  %v923 = vmul.f32 %v921, %v922
  %v924 = vsub.f32 1.0, %v923
  %v925 = vmul.f32 %v922, %v924
  %v926 = vadd.f32 %v922, %v925
  %vm927 = vweird.f32 %v921
  %vm928 = vweird.f32 %v922
  %vm929 = vmor %vm927, %vm928
  %v930 = vsel %vm929, %v922, %v926
  %v931 = vand.u32 2147483647, %v921
  %vm932 = vcmp.eq.f32.partialorder %v931, 8.507059e+37
  %v933 = vand.u32 %v921, 2147483648
  %v934 = vor.u32 1.1754944e-38, %v933
  %v935 = vsel %vm932, %v934, %v930
  %v936 = vmul.f32 1.0, %v935
  %v937 = vtanh.pop %v917
  %v938 = vmul.f32 %v936, %v885
  %940 = vrot.lane.b32.xlu0 %v937, 64
  %v941 = vpop.permute.xlu0 %940
  %v943 = vmul.f32 %v936, %v941
  %945 = vrot.lane.b32.xlu0 %v943, 32
  %v946 = vpop.permute.xlu0 %945
  %v948 = vadd.f32 %v938, %v946
  %v949 = vtanh.pop %v948
  %951 = vrot.lane.b32.xlu0 %v949, 64
  %v952 = vpop.permute.xlu0 %951
  %v954 = vmul.f32 %v936, %v952
  %956 = vrot.lane.b32.xlu0 %v954, 32
  %v957 = vpop.permute.xlu0 %956
  %v958 = vsel %vm83, %v957, 0
  %960 = vmatpush.msra.mxu0 0.0
  %961 = vmatpush.msra.mxu0 0.0
  %962 = vmatpush.msra.mxu0 0.0
  %963 = vmatpush.msra.mxu0 0.0
  %964 = vmatpush.msra.mxu0 0.0
  %965 = vmatpush.msra.mxu0 0.0
  %966 = vmatpush.msra.mxu0 0.0
  %967 = vmatpush.msra.mxu0 0.0
  %968 = vmatpush.msra.mxu0 0.0
  %969 = vmatpush.msra.mxu0 0.0
  %970 = vmatpush.msra.mxu0 0.0
  %971 = vmatpush.msra.mxu0 0.0
  %972 = vmatpush.msra.mxu0 %v756
  %973 = vmatpush.msra.mxu0 %v755
  %974 = vmatpush.msra.mxu0 %v754
  %975 = vmatpush.msra.mxu0 %v753
  %976 = vmatmul.f32.gmra.mxu0 %v958
  %v977 = vpop.f32.mrf.mxu0
  %v978 = vadd.f32 0.0, %v977
  %979 = vdwg.mxu0
  %v980 = vadd.f32 %v817, %v978
  %v981 = vxor.u32 %v980, 2147483648
  %v982 = vmul.f32 %v981, 1.442695
  %v983 = vpow.pop %v982
  %v984 = vadd.f32 %v983, 1.0
  %v985 = vrcp.pop %v984
  %v986 = vmul.f32 %v984, %v985
  %v987 = vsub.f32 1.0, %v986
  %v988 = vmul.f32 %v985, %v987
  %v989 = vadd.f32 %v985, %v988
  %vm990 = vweird.f32 %v984
  %vm991 = vweird.f32 %v985
  %vm992 = vmor %vm990, %vm991
  %v993 = vsel %vm992, %v985, %v989
  %v994 = vand.u32 2147483647, %v984
  %vm995 = vcmp.eq.f32.partialorder %v994, 8.507059e+37
  %v996 = vand.u32 %v984, 2147483648
  %v997 = vor.u32 1.1754944e-38, %v996
  %v998 = vsel %vm995, %v997, %v993
  %v999 = vmul.f32 1.0, %v998
  %v1000 = vtanh.pop %v980
  %v1001 = vmul.f32 %v999, %v948
  %1003 = vrot.lane.b32.xlu0 %v1000, 64
  %v1004 = vpop.permute.xlu0 %1003
  %v1006 = vmul.f32 %v999, %v1004
  %1008 = vrot.lane.b32.xlu0 %v1006, 32
  %v1009 = vpop.permute.xlu0 %1008
  %v1011 = vadd.f32 %v1001, %v1009
  %v1012 = vtanh.pop %v1011
  %1014 = vrot.lane.b32.xlu0 %v1012, 64
  %v1015 = vpop.permute.xlu0 %1014
  %v1017 = vmul.f32 %v999, %v1015
  %1019 = vrot.lane.b32.xlu0 %v1017, 32
  %v1020 = vpop.permute.xlu0 %1019
  %v1021 = vsel %vm83, %v1020, 0
  %1023 = vmatpush.msra.mxu0 0.0
  %1024 = vmatpush.msra.mxu0 0.0
  %1025 = vmatpush.msra.mxu0 0.0
  %1026 = vmatpush.msra.mxu0 0.0
  %1027 = vmatpush.msra.mxu0 0.0
  %1028 = vmatpush.msra.mxu0 0.0
  %1029 = vmatpush.msra.mxu0 0.0
  %1030 = vmatpush.msra.mxu0 0.0
  %1031 = vmatpush.msra.mxu0 0.0
  %1032 = vmatpush.msra.mxu0 0.0
  %1033 = vmatpush.msra.mxu0 0.0
  %1034 = vmatpush.msra.mxu0 0.0
  %1035 = vmatpush.msra.mxu0 %v756
  %1036 = vmatpush.msra.mxu0 %v755
  %1037 = vmatpush.msra.mxu0 %v754
  %1038 = vmatpush.msra.mxu0 %v753
  %1039 = vmatmul.f32.gmra.mxu0 %v1021
  %v1040 = vpop.f32.mrf.mxu0
  %v1041 = vadd.f32 0.0, %v1040
  %1042 = vdwg.mxu0
  %v1043 = vadd.f32 %v820, %v1041
  %v1044 = vxor.u32 %v1043, 2147483648
  %v1045 = vmul.f32 %v1044, 1.442695
  %v1046 = vpow.pop %v1045
  %v1047 = vadd.f32 %v1046, 1.0
  %v1048 = vrcp.pop %v1047
  %v1049 = vmul.f32 %v1047, %v1048
  %v1050 = vsub.f32 1.0, %v1049
  %v1051 = vmul.f32 %v1048, %v1050
  %v1052 = vadd.f32 %v1048, %v1051
  %vm1053 = vweird.f32 %v1047
  %vm1054 = vweird.f32 %v1048
  %vm1055 = vmor %vm1053, %vm1054
  %v1056 = vsel %vm1055, %v1048, %v1052
  %v1057 = vand.u32 2147483647, %v1047
  %vm1058 = vcmp.eq.f32.partialorder %v1057, 8.507059e+37
  %v1059 = vand.u32 %v1047, 2147483648
  %v1060 = vor.u32 1.1754944e-38, %v1059
  %v1061 = vsel %vm1058, %v1060, %v1056
  %v1062 = vmul.f32 1.0, %v1061
  %v1063 = vtanh.pop %v1043
  %v1064 = vmul.f32 %v1062, %v1011
  %1066 = vrot.lane.b32.xlu0 %v1063, 64
  %v1067 = vpop.permute.xlu0 %1066
  %v1069 = vmul.f32 %v1062, %v1067
  %1071 = vrot.lane.b32.xlu0 %v1069, 32
  %v1072 = vpop.permute.xlu0 %1071
  %v1074 = vadd.f32 %v1064, %v1072
  %v1075 = vtanh.pop %v1074
  %1077 = vrot.lane.b32.xlu0 %v1075, 64
  %v1078 = vpop.permute.xlu0 %1077
  %v1080 = vmul.f32 %v1062, %v1078
  %1082 = vrot.lane.b32.xlu0 %v1080, 32
  %v1083 = vpop.permute.xlu0 %1082
  %v1084 = vsel %vm83, %v1083, 0
  %1086 = vmatpush.msra.mxu0 0.0
  %1087 = vmatpush.msra.mxu0 0.0
  %1088 = vmatpush.msra.mxu0 0.0
  %1089 = vmatpush.msra.mxu0 0.0
  %1090 = vmatpush.msra.mxu0 0.0
  %1091 = vmatpush.msra.mxu0 0.0
  %1092 = vmatpush.msra.mxu0 0.0
  %1093 = vmatpush.msra.mxu0 0.0
  %1094 = vmatpush.msra.mxu0 0.0
  %1095 = vmatpush.msra.mxu0 0.0
  %1096 = vmatpush.msra.mxu0 0.0
  %1097 = vmatpush.msra.mxu0 0.0
  %1098 = vmatpush.msra.mxu0 %v756
  %1099 = vmatpush.msra.mxu0 %v755
  %1100 = vmatpush.msra.mxu0 %v754
  %1101 = vmatpush.msra.mxu0 %v753
  %1102 = vmatmul.f32.gmra.mxu0 %v1084
  %v1103 = vpop.f32.mrf.mxu0
  %v1104 = vadd.f32 0.0, %v1103
  %1105 = vdwg.mxu0
  %v1106 = vadd.f32 %v823, %v1104
  %v1107 = vxor.u32 %v1106, 2147483648
  %v1108 = vmul.f32 %v1107, 1.442695
  %v1109 = vpow.pop %v1108
  %v1110 = vadd.f32 %v1109, 1.0
  %v1111 = vrcp.pop %v1110
  %v1112 = vmul.f32 %v1110, %v1111
  %v1113 = vsub.f32 1.0, %v1112
  %v1114 = vmul.f32 %v1111, %v1113
  %v1115 = vadd.f32 %v1111, %v1114
  %vm1116 = vweird.f32 %v1110
  %vm1117 = vweird.f32 %v1111
  %vm1118 = vmor %vm1116, %vm1117
  %v1119 = vsel %vm1118, %v1111, %v1115
  %v1120 = vand.u32 2147483647, %v1110
  %vm1121 = vcmp.eq.f32.partialorder %v1120, 8.507059e+37
  %v1122 = vand.u32 %v1110, 2147483648
  %v1123 = vor.u32 1.1754944e-38, %v1122
  %v1124 = vsel %vm1121, %v1123, %v1119
  %v1125 = vmul.f32 1.0, %v1124
  %v1126 = vtanh.pop %v1106
  %v1127 = vmul.f32 %v1125, %v1074
  %1129 = vrot.lane.b32.xlu0 %v1126, 64
  %v1130 = vpop.permute.xlu0 %1129
  %v1132 = vmul.f32 %v1125, %v1130
  %1134 = vrot.lane.b32.xlu0 %v1132, 32
  %v1135 = vpop.permute.xlu0 %1134
  %v1137 = vadd.f32 %v1127, %v1135
  %v1138 = vtanh.pop %v1137
  %1140 = vrot.lane.b32.xlu0 %v1138, 64
  %v1141 = vpop.permute.xlu0 %1140
  %v1143 = vmul.f32 %v1125, %v1141
  %1145 = vrot.lane.b32.xlu0 %v1143, 32
  %v1146 = vpop.permute.xlu0 %1145
  %v1147 = vsel %vm83, %v1146, 0
  %1149 = vmatpush.msra.mxu0 0.0
  %1150 = vmatpush.msra.mxu0 0.0
  %1151 = vmatpush.msra.mxu0 0.0
  %1152 = vmatpush.msra.mxu0 0.0
  %1153 = vmatpush.msra.mxu0 0.0
  %1154 = vmatpush.msra.mxu0 0.0
  %1155 = vmatpush.msra.mxu0 0.0
  %1156 = vmatpush.msra.mxu0 0.0
  %1157 = vmatpush.msra.mxu0 0.0
  %1158 = vmatpush.msra.mxu0 0.0
  %1159 = vmatpush.msra.mxu0 0.0
  %1160 = vmatpush.msra.mxu0 0.0
  %1161 = vmatpush.msra.mxu0 %v756
  %1162 = vmatpush.msra.mxu0 %v755
  %1163 = vmatpush.msra.mxu0 %v754
  %1164 = vmatpush.msra.mxu0 %v753
  %1165 = vmatmul.f32.gmra.mxu0 %v1147
  %v1166 = vpop.f32.mrf.mxu0
  %v1167 = vadd.f32 0.0, %v1166
  %1168 = vdwg.mxu0
  %v1169 = vadd.f32 %v826, %v1167
  %v1170 = vxor.u32 %v1169, 2147483648
  %v1171 = vmul.f32 %v1170, 1.442695
  %v1172 = vpow.pop %v1171
  %v1173 = vadd.f32 %v1172, 1.0
  %v1174 = vrcp.pop %v1173
  %v1175 = vmul.f32 %v1173, %v1174
  %v1176 = vsub.f32 1.0, %v1175
  %v1177 = vmul.f32 %v1174, %v1176
  %v1178 = vadd.f32 %v1174, %v1177
  %vm1179 = vweird.f32 %v1173
  %vm1180 = vweird.f32 %v1174
  %vm1181 = vmor %vm1179, %vm1180
  %v1182 = vsel %vm1181, %v1174, %v1178
  %v1183 = vand.u32 2147483647, %v1173
  %vm1184 = vcmp.eq.f32.partialorder %v1183, 8.507059e+37
  %v1185 = vand.u32 %v1173, 2147483648
  %v1186 = vor.u32 1.1754944e-38, %v1185
  %v1187 = vsel %vm1184, %v1186, %v1182
  %v1188 = vmul.f32 1.0, %v1187
  %v1189 = vtanh.pop %v1169
  %v1190 = vmul.f32 %v1188, %v1137
  %1192 = vrot.lane.b32.xlu0 %v1189, 64
  %v1193 = vpop.permute.xlu0 %1192
  %v1195 = vmul.f32 %v1188, %v1193
  %1197 = vrot.lane.b32.xlu0 %v1195, 32
  %v1198 = vpop.permute.xlu0 %1197
  %v1200 = vadd.f32 %v1190, %v1198
  %v1201 = vtanh.pop %v1200
  %1203 = vrot.lane.b32.xlu0 %v1201, 64
  %v1204 = vpop.permute.xlu0 %1203
  %v1206 = vmul.f32 %v1188, %v1204
  %1208 = vrot.lane.b32.xlu0 %v1206, 32
  %v1209 = vpop.permute.xlu0 %1208
  %v1210 = vsel %vm83, %v1209, 0
  %1212 = vmatpush.msra.mxu0 0.0
  %1213 = vmatpush.msra.mxu0 0.0
  %1214 = vmatpush.msra.mxu0 0.0
  %1215 = vmatpush.msra.mxu0 0.0
  %1216 = vmatpush.msra.mxu0 0.0
  %1217 = vmatpush.msra.mxu0 0.0
  %1218 = vmatpush.msra.mxu0 0.0
  %1219 = vmatpush.msra.mxu0 0.0
  %1220 = vmatpush.msra.mxu0 0.0
  %1221 = vmatpush.msra.mxu0 0.0
  %1222 = vmatpush.msra.mxu0 0.0
  %1223 = vmatpush.msra.mxu0 0.0
  %1224 = vmatpush.msra.mxu0 %v756
  %1225 = vmatpush.msra.mxu0 %v755
  %1226 = vmatpush.msra.mxu0 %v754
  %1227 = vmatpush.msra.mxu0 %v753
  %1228 = vmatmul.f32.gmra.mxu0 %v1210
  %v1229 = vpop.f32.mrf.mxu0
  %v1230 = vadd.f32 0.0, %v1229
  %1231 = vdwg.mxu0
  %v1232 = vadd.f32 %v829, %v1230
  %v1233 = vxor.u32 %v1232, 2147483648
  %v1234 = vmul.f32 %v1233, 1.442695
  %v1235 = vpow.pop %v1234
  %v1236 = vadd.f32 %v1235, 1.0
  %v1237 = vrcp.pop %v1236
  %v1238 = vmul.f32 %v1236, %v1237
  %v1239 = vsub.f32 1.0, %v1238
  %v1240 = vmul.f32 %v1237, %v1239
  %v1241 = vadd.f32 %v1237, %v1240
  %vm1242 = vweird.f32 %v1236
  %vm1243 = vweird.f32 %v1237
  %vm1244 = vmor %vm1242, %vm1243
  %v1245 = vsel %vm1244, %v1237, %v1241
  %v1246 = vand.u32 2147483647, %v1236
  %vm1247 = vcmp.eq.f32.partialorder %v1246, 8.507059e+37
  %v1248 = vand.u32 %v1236, 2147483648
  %v1249 = vor.u32 1.1754944e-38, %v1248
  %v1250 = vsel %vm1247, %v1249, %v1245
  %v1251 = vmul.f32 1.0, %v1250
  %v1252 = vtanh.pop %v1232
  %v1253 = vmul.f32 %v1251, %v1200
  %1255 = vrot.lane.b32.xlu0 %v1252, 64
  %v1256 = vpop.permute.xlu0 %1255
  %v1258 = vmul.f32 %v1251, %v1256
  %1260 = vrot.lane.b32.xlu0 %v1258, 32
  %v1261 = vpop.permute.xlu0 %1260
  %v1263 = vadd.f32 %v1253, %v1261
  %v1264 = vtanh.pop %v1263
  %1266 = vrot.lane.b32.xlu0 %v1264, 64
  %v1267 = vpop.permute.xlu0 %1266
  %v1269 = vmul.f32 %v1251, %v1267
  %1271 = vrot.lane.b32.xlu0 %v1269, 32
  %v1272 = vpop.permute.xlu0 %1271
  %v1273 = vsel %vm83, %v1272, 0
  %1275 = vmatpush.msra.mxu0 0.0
  %1276 = vmatpush.msra.mxu0 0.0
  %1277 = vmatpush.msra.mxu0 0.0
  %1278 = vmatpush.msra.mxu0 0.0
  %1279 = vmatpush.msra.mxu0 0.0
  %1280 = vmatpush.msra.mxu0 0.0
  %1281 = vmatpush.msra.mxu0 0.0
  %1282 = vmatpush.msra.mxu0 0.0
  %1283 = vmatpush.msra.mxu0 0.0
  %1284 = vmatpush.msra.mxu0 0.0
  %1285 = vmatpush.msra.mxu0 0.0
  %1286 = vmatpush.msra.mxu0 0.0
  %1287 = vmatpush.msra.mxu0 %v756
  %1288 = vmatpush.msra.mxu0 %v755
  %1289 = vmatpush.msra.mxu0 %v754
  %1290 = vmatpush.msra.mxu0 %v753
  %1291 = vmatmul.f32.gmra.mxu0 %v1273
  %v1292 = vpop.f32.mrf.mxu0
  %v1293 = vadd.f32 0.0, %v1292
  %1294 = vdwg.mxu0
  %v1295 = vadd.f32 %v832, %v1293
  %v1296 = vxor.u32 %v1295, 2147483648
  %v1297 = vmul.f32 %v1296, 1.442695
  %v1298 = vpow.pop %v1297
  %v1299 = vadd.f32 %v1298, 1.0
  %v1300 = vrcp.pop %v1299
  %v1301 = vmul.f32 %v1299, %v1300
  %v1302 = vsub.f32 1.0, %v1301
  %v1303 = vmul.f32 %v1300, %v1302
  %v1304 = vadd.f32 %v1300, %v1303
  %vm1305 = vweird.f32 %v1299
  %vm1306 = vweird.f32 %v1300
  %vm1307 = vmor %vm1305, %vm1306
  %v1308 = vsel %vm1307, %v1300, %v1304
  %v1309 = vand.u32 2147483647, %v1299
  %vm1310 = vcmp.eq.f32.partialorder %v1309, 8.507059e+37
  %v1311 = vand.u32 %v1299, 2147483648
  %v1312 = vor.u32 1.1754944e-38, %v1311
  %v1313 = vsel %vm1310, %v1312, %v1308
  %v1314 = vmul.f32 1.0, %v1313
  %v1315 = vtanh.pop %v1295
  %v1316 = vmul.f32 %v1314, %v1263
  %1318 = vrot.lane.b32.xlu0 %v1315, 64
  %v1319 = vpop.permute.xlu0 %1318
  %v1321 = vmul.f32 %v1314, %v1319
  %1323 = vrot.lane.b32.xlu0 %v1321, 32
  %v1324 = vpop.permute.xlu0 %1323
  %v1326 = vadd.f32 %v1316, %v1324
  %v1327 = vtanh.pop %v1326
  %1329 = vrot.lane.b32.xlu0 %v1327, 64
  %v1330 = vpop.permute.xlu0 %1329
  %v1332 = vmul.f32 %v1314, %v1330
  %1334 = vrot.lane.b32.xlu0 %v1332, 32
  %v1335 = vpop.permute.xlu0 %1334
  %v1337 = vsel %vm83, %v1335, %v1326
  %s1338 = scalar_lea.vmem %s8, 8
  %1339 = vst.msk [vmem:[%s1338] sm:$0xff] %vm747, %v1337
  // Predicated region
  $region34: #{encoder_forward.1} parent=0 // pred_check
    _
  $region35: #{encoder_forward.1} parent=0 // pred_check_branch
    %1341 = sbr.rel (0) target = $region37
  $region36: #{encoder_forward.1} parent=0 // pred_region
    _
  $region37: #{encoder_forward.1} parent=0 // pred_fallthru
    _
  // Predicated region
  $region38: #{encoder_forward.1} parent=0 // pred_check
    _
  $region39: #{encoder_forward.1} parent=0 // pred_check_branch
    %1343 = sbr.rel (0) target = $region41
  $region40: #{encoder_forward.1} parent=0 // pred_region
    _
  $region41: #{encoder_forward.1} parent=0 // pred_fallthru
    _

</llo_original>
